<compile_context>
chip_gen: v5e
topology: v5e:2x2
jax: 0.10.0
libtpu: 0.0.40
codegen_flags: <defaults>
</compile_context>

<pallas_src>
import jax
import jax.numpy as jnp
from jax.experimental import pallas as pl
from jax.experimental.pallas import tpu as pltpu


_SQRT_2_OVER_PI = 0.7978845608028654


def _gelu_tanh(x):
    # tanh-approximate GELU (same formula used in kernel and reference).
    return 0.5 * x * (1.0 + jnp.tanh(_SQRT_2_OVER_PI * (x + 0.044715 * x * x * x)))


# --------------------------------------------------------------------------
# Real-valued matmul factorization of ortho-normalized rfft2 / irfft2.
#   forward:  X_re = x @ F2_RE , X_im = x @ F2_IM      x: (M, H*W)
#   inverse:  y    = Y_re @ I2_RE + Y_im @ I2_IM       Y: (M, H*Wf)
# (k, kw) columns/rows are flattened row-major, matching (C, H, Wf).reshape.
# --------------------------------------------------------------------------
def _rfft2_matrices(H, W):
    assert W % 2 == 0, "even W required (matches torch irfft2 round-trip shape)"
    Wf = W // 2 + 1
    h = jnp.arange(H, dtype=jnp.float32)
    w = jnp.arange(W, dtype=jnp.float32)
    k = jnp.arange(H, dtype=jnp.float32)
    kw = jnp.arange(Wf, dtype=jnp.float32)
    # phases reduced mod 1 turn before *2*pi (keeps f32 cos/sin accurate)
    ph = 2.0 * jnp.pi * jnp.mod(jnp.outer(h, k) / H, 1.0)     # (H, H)   h*k/H
    pw = 2.0 * jnp.pi * jnp.mod(jnp.outer(w, kw) / W, 1.0)    # (W, Wf)  w*kw/W
    phase = ph[:, None, :, None] + pw[None, :, None, :]       # (H, W, H, Wf)
    scale = 1.0 / jnp.sqrt(jnp.float32(H * W))

    f2_re = (jnp.cos(phase) * scale).reshape(H * W, H * Wf)
    f2_im = (-jnp.sin(phase) * scale).reshape(H * W, H * Wf)

    # Hermitian fold weights along the one-sided W axis (irfft semantics):
    idx = jnp.arange(Wf)
    c = jnp.where((idx == 0) | (idx == W // 2), 1.0, 2.0).astype(jnp.float32)
    phase_i = jnp.transpose(phase, (2, 3, 0, 1))              # (H, Wf, H, W)
    cw = c[None, :, None, None]
    i2_re = (cw * jnp.cos(phase_i) * scale).reshape(H * Wf, H * W)
    i2_im = (-cw * jnp.sin(phase_i) * scale).reshape(H * Wf, H * W)
    return f2_re, f2_im, i2_re, i2_im


def _pick_btile(B, C, max_rows):
    """Largest divisor of B with Btile*C <= max_rows, preferring >= 2 grid steps
    (keeps both TensorCores busy on v7x and exercises the i/o pipeline).
    On v5e/v6e, raise max_rows (128-512) for DFT-dominated shapes."""
    divs = [d for d in range(1, B + 1) if B % d == 0 and d * C <= max_rows]
    if not divs:
        return 1
    multi = [d for d in divs if B // d >= 2]
    return max(multi) if multi else max(divs)


def _const_spec(shape):
    """Grid-invariant block: resident in VMEM; single-buffered when the
    installed jax supports pipeline_mode=pl.Buffered (halves resident VMEM)."""
    nd = len(shape)

    def idx(b):
        return (0,) * nd

    try:
        return pl.BlockSpec(shape, idx, pipeline_mode=pl.Buffered(1))
    except Exception:   # pragma: no cover - older jax without pipeline_mode
        return pl.BlockSpec(shape, idx)


# --------------------------------------------------------------------------
# Fused kernel: Btile images per grid step; everything stays in VMEM.
# Activations are flat channel-major: (Btile*channels, H*W) / (.., H*Wf).
# --------------------------------------------------------------------------
def ffb_kernel(x_ref,                           # (1, Bt*C, HW)
               w0_ref, b0_ref,                  # (Bt*2C, Bt*C), (Bt*2C, 1)
               f2r_ref, f2i_ref,                # (HW, HWf)      bf16
               i2r_ref, i2i_ref,                # (HWf, HW)      bf16
               gr_ref, gi_ref,                  # (Bt*2C, HWf)   GFB weight (LFB rows zero)
               wl1r_ref, wl1i_ref, bl1_ref,     # (Bt*2C, Bt*2C) x2, (Bt*2C, 1)
               wl2_ref, bl2_ref,                # (Bt*2C, Bt*2C), (Bt*2C, 1)
               wqa_ref, wqr_ref, wqi_ref,       # (Bt*C, Bt*2C)  folded final conv
               b1_ref,                          # (Bt*C, 1)
               o_ref):                          # (1, Bt*C, HW)
    f32 = jnp.float32
    bf16 = jnp.bfloat16
    x = x_ref[0].astype(f32)                                       # (BtC, HW)

    # ---- conv: 1x1 (C -> 2C per image, block-diagonal over the tile) + GELU --
    h0 = jnp.dot(w0_ref[...], x, preferred_element_type=f32) + b0_ref[...]
    h0 = _gelu_tanh(h0)                                            # (Bt2C, HW)

    # ---- forward rfft2 of BOTH branches at once (shared DFT, M = Bt*2C) ------
    h0b = h0.astype(bf16)
    a_re = jnp.dot(h0b, f2r_ref[...], preferred_element_type=f32)  # (Bt2C, HWf)
    a_im = jnp.dot(h0b, f2i_ref[...], preferred_element_type=f32)

    # ---- GlobalFourierBlock: complex-weight multiply (LFB rows of g are 0) ---
    gr = gr_ref[...]
    gi = gi_ref[...]
    p_re = a_re * gr - a_im * gi
    p_im = a_re * gi + a_im * gr

    # ---- LocalFourierBlock: conv1x1 -> GELU -> conv1x1 on [Re; Im] -----------
    # wl1r/wl1i are column-padded so they pick only the LFB half of a_re/a_im.
    h1 = (jnp.dot(wl1r_ref[...], a_re, preferred_element_type=f32)
          + jnp.dot(wl1i_ref[...], a_im, preferred_element_type=f32)
          + bl1_ref[...])
    h1 = _gelu_tanh(h1)
    h2 = jnp.dot(wl2_ref[...], h1, preferred_element_type=f32) + bl2_ref[...]

    # ---- final 1x1 conv folded before the inverse DFT (commutes with it) -----
    q_re = (jnp.dot(wqa_ref[...], p_re, preferred_element_type=f32)
            + jnp.dot(wqr_ref[...], h2, preferred_element_type=f32))
    q_im = (jnp.dot(wqa_ref[...], p_im, preferred_element_type=f32)
            + jnp.dot(wqi_ref[...], h2, preferred_element_type=f32))

    # ---- inverse DFT + bias (only C rows per image thanks to the folding) ----
    out = (jnp.dot(q_re.astype(bf16), i2r_ref[...], preferred_element_type=f32)
           + jnp.dot(q_im.astype(bf16), i2i_ref[...], preferred_element_type=f32)
           + b1_ref[...])                                          # (BtC, HW)
    o_ref[0] = out.astype(o_ref.dtype)


# --------------------------------------------------------------------------
# Wrapper: layout plumbing (flatten spatial, split / pad / block-diag the torch
# weights, tile the GFB weight and biases over the batch tile) + pallas_call.
# --------------------------------------------------------------------------
def fourier_filter_block(x, params, *, max_tile_rows=64):
    B, C, H, W = x.shape
    assert W % 2 == 0, "even W required"
    Wf = W // 2 + 1
    HW, HWf = H * W, H * Wf
    C2 = params["w0"].shape[0]
    assert C2 == 2 * C, "FourierFilterBlock semantics require head == 2"

    Bt = _pick_btile(B, C, max_tile_rows)
    nsteps = B // Bt
    MC, M2 = Bt * C, Bt * C2

    f32 = jnp.float32
    bf16 = jnp.bfloat16

    f2r, f2i, i2r, i2i = _rfft2_matrices(H, W)
    f2r, f2i = f2r.astype(bf16), f2i.astype(bf16)
    i2r, i2i = i2r.astype(bf16), i2i.astype(bf16)

    eye = jnp.eye(Bt, dtype=f32)
    bd = lambda wmat: jnp.kron(eye, wmat)           # block-diagonal over the tile
    tile_rows = lambda v: jnp.tile(v, (Bt, 1))

    zc = jnp.zeros((C2, C), f32)
    zq = jnp.zeros((C, C), f32)

    w0 = params["w0"].astype(f32)                    # (2C, C)
    wl1 = params["wl1"].astype(f32)                  # (2C, 2C)
    wl2 = params["wl2"].astype(f32)                  # (2C, 2C)
    w1 = params["w1"].astype(f32)                    # (C, 2C)

    w0_bd = bd(w0)                                                 # (M2, MC)
    wl1r_bd = bd(jnp.concatenate([zc, wl1[:, :C]], axis=1))        # picks Re(X2)
    wl1i_bd = bd(jnp.concatenate([zc, wl1[:, C:]], axis=1))        # picks Im(X2)
    wl2_bd = bd(wl2)                                               # (M2, M2)
    w1a, w1b = w1[:, :C], w1[:, C:]
    wqa_bd = bd(jnp.concatenate([w1a, zq], axis=1))  # picks GFB product (top C rows)
    wqr_bd = bd(jnp.concatenate([w1b, zq], axis=1))  # picks fr = h2[:C]
    wqi_bd = bd(jnp.concatenate([zq, w1b], axis=1))  # picks fi = h2[C:]

    b0_t = tile_rows(params["b0"].reshape(C2, 1).astype(f32))
    bl1_t = tile_rows(params["bl1"].reshape(C2, 1).astype(f32))
    bl2_t = tile_rows(params["bl2"].reshape(C2, 1).astype(f32))
    b1_t = tile_rows(params["b1"].reshape(C, 1).astype(f32))

    gw_re = params["gw"][..., 0].reshape(C, HWf).astype(f32)
    gw_im = params["gw"][..., 1].reshape(C, HWf).astype(f32)
    zg = jnp.zeros((C, HWf), f32)
    gr_t = tile_rows(jnp.concatenate([gw_re, zg], axis=0))         # (M2, HWf)
    gi_t = tile_rows(jnp.concatenate([gw_im, zg], axis=0))

    xr = x.reshape(nsteps, MC, HW)

    consts = (w0_bd, b0_t, f2r, f2i, i2r, i2i, gr_t, gi_t,
              wl1r_bd, wl1i_bd, bl1_t, wl2_bd, bl2_t,
              wqa_bd, wqr_bd, wqi_bd, b1_t)

    # Explicit scoped-VMEM budget: resident constants (single-buffered) + x/out
    # double buffers + a generous bound on live f32 activations, +50% headroom.
    const_bytes = sum(int(a.size) * a.dtype.itemsize for a in consts)
    io_bytes = 2 * 2 * MC * HW * x.dtype.itemsize
    act_bytes = 16 * M2 * max(HW, HWf) * 4
    vmem_limit = max(32 * 1024 * 1024,
                     min(100 * 1024 * 1024,
                         int(1.5 * (const_bytes + io_bytes + act_bytes))))

    io_spec = pl.BlockSpec((1, MC, HW), lambda b: (b, 0, 0))
    out = pl.pallas_call(
        ffb_kernel,
        out_shape=jax.ShapeDtypeStruct((nsteps, MC, HW), x.dtype),
        grid=(nsteps,),
        in_specs=[
            io_spec,                         # x
            _const_spec((M2, MC)),           # w0   (block-diag)
            _const_spec((M2, 1)),            # b0
            _const_spec((HW, HWf)),          # f2_re (bf16)
            _const_spec((HW, HWf)),          # f2_im (bf16)
            _const_spec((HWf, HW)),          # i2_re (bf16)
            _const_spec((HWf, HW)),          # i2_im (bf16)
            _const_spec((M2, HWf)),          # gw_re (tiled, LFB rows zero)
            _const_spec((M2, HWf)),          # gw_im
            _const_spec((M2, M2)),           # wl1 real half (padded, block-diag)
            _const_spec((M2, M2)),           # wl1 imag half (padded, block-diag)
            _const_spec((M2, 1)),            # bl1
            _const_spec((M2, M2)),           # wl2  (block-diag)
            _const_spec((M2, 1)),            # bl2
            _const_spec((MC, M2)),           # w1a folded onto GFB product
            _const_spec((MC, M2)),           # w1b folded onto fr
            _const_spec((MC, M2)),           # w1b folded onto fi
            _const_spec((MC, 1)),            # b1
        ],
        out_specs=io_spec,
        compiler_params=pltpu.CompilerParams(
            dimension_semantics=("parallel",),
            vmem_limit_bytes=vmem_limit),
    )(xr, *consts)
    return out.reshape(B, C, H, W)


# --------------------------------------------------------------------------
# Pure-JAX reference (uses jnp.fft) for correctness checking.
# --------------------------------------------------------------------------
def fourier_filter_block_reference(x, params):
    B, C, H, W = x.shape
    hi = jax.lax.Precision.HIGHEST

    def conv1x1(w, b, t):  # w: (O, I), t: (B, I, H, W)
        return jnp.einsum("oi,bihw->bohw", w, t,
                          precision=hi) + b.reshape(1, -1, 1, 1)

    out = _gelu_tanh(conv1x1(params["w0"], params["b0"], x))
    x1, x2 = out[:, :C], out[:, C:]

    # GlobalFourierBlock
    X1 = jnp.fft.rfft2(x1, axes=(2, 3), norm="ortho")
    gw = params["gw"][..., 0] + 1j * params["gw"][..., 1]          # (C, H, Wf)
    y1 = jnp.fft.irfft2(X1 * gw[None], s=(H, W), axes=(2, 3), norm="ortho")

    # LocalFourierBlock
    X2 = jnp.fft.rfft2(x2, axes=(2, 3), norm="ortho")
    xf = jnp.concatenate([X2.real, X2.imag], axis=1)
    h = _gelu_tanh(conv1x1(params["wl1"], params["bl1"], xf))
    h = conv1x1(params["wl2"], params["bl2"], h)
    fr, fi = h[:, :C], h[:, C:]
    y2 = jnp.fft.irfft2(fr + 1j * fi, s=(H, W), axes=(2, 3), norm="ortho")

    cat = jnp.concatenate([y1, y2], axis=1)
    return conv1x1(params["w1"], params["b1"], cat)


def make_params(key, dim, head, H, W):
    assert head == 2, "chunk(2) in forward implies head == 2"
    C, C2 = dim, dim * head
    Wf = W // 2 + 1
    ks = jax.random.split(key, 9)

    def rnd(k, shape, scale):
        return scale * jax.random.normal(k, shape, jnp.float32)

    return {
        "w0": rnd(ks[0], (C2, C), 0.4),          # conv   (1x1, dim -> dim*head)
        "b0": rnd(ks[1], (C2,), 0.1),
        "gw": rnd(ks[2], (C, H, Wf, 2), 0.02),   # GFB complex_weight
        "wl1": rnd(ks[3], (C2, C2), 0.3),        # LFB conv #1
        "bl1": rnd(ks[4], (C2,), 0.1),
        "wl2": rnd(ks[5], (C2, C2), 0.3),        # LFB conv #2
        "bl2": rnd(ks[6], (C2,), 0.1),
        "w1": rnd(ks[7], (C, C2), 0.3),          # conv1  (1x1, dim*head -> dim)
        "b1": rnd(ks[8], (C,), 0.1),
    }


if __name__ == "__main__":
    B, dim, head, H, W = 4, 4, 2, 16, 16

    key = jax.random.PRNGKey(0)
    kx, kp = jax.random.split(key)
    x = jax.random.normal(kx, (B, dim, H, W), jnp.float32)   # NCHW, like torch
    params = make_params(kp, dim, head, H, W)

    out = jax.jit(fourier_filter_block)(x, params)
    out = jax.block_until_ready(out)

    ref = fourier_filter_block_reference(x, params)
    assert out.shape == ref.shape == (B, dim, H, W)
    err = float(jnp.max(jnp.abs(out - ref)))
    scale = float(jnp.max(jnp.abs(ref)))
    # bf16 DFT operands with f32 MXU accumulation set the error floor.
    assert err < 5e-2 * max(1.0, scale), f"max abs err={err} (ref max={scale})"

    print("KERNEL_OK")
</pallas_src>

<mosaic_0001>
module attributes {stable_mosaic.version = 11 : i64} {
  func.func @ffb_kernel(%arg0: i32, %arg1: memref<1x8x256xf32, #tpu.memory_space<vmem>>, %arg2: memref<16x8xf32, #tpu.memory_space<vmem>>, %arg3: memref<16x1xf32, #tpu.memory_space<vmem>>, %arg4: memref<256x144xbf16, #tpu.memory_space<vmem>>, %arg5: memref<256x144xbf16, #tpu.memory_space<vmem>>, %arg6: memref<144x256xbf16, #tpu.memory_space<vmem>>, %arg7: memref<144x256xbf16, #tpu.memory_space<vmem>>, %arg8: memref<16x144xf32, #tpu.memory_space<vmem>>, %arg9: memref<16x144xf32, #tpu.memory_space<vmem>>, %arg10: memref<16x16xf32, #tpu.memory_space<vmem>>, %arg11: memref<16x16xf32, #tpu.memory_space<vmem>>, %arg12: memref<16x1xf32, #tpu.memory_space<vmem>>, %arg13: memref<16x16xf32, #tpu.memory_space<vmem>>, %arg14: memref<16x1xf32, #tpu.memory_space<vmem>>, %arg15: memref<8x16xf32, #tpu.memory_space<vmem>>, %arg16: memref<8x16xf32, #tpu.memory_space<vmem>>, %arg17: memref<8x16xf32, #tpu.memory_space<vmem>>, %arg18: memref<8x1xf32, #tpu.memory_space<vmem>>, %arg19: memref<1x8x256xf32, #tpu.memory_space<vmem>>) attributes {dimension_semantics = [#tpu.dimension_semantics<parallel>], iteration_bounds = array<i64: 2>, scalar_prefetch = 0 : i64, scratch_operands = 0 : i64, tpu.core_type = #tpu.core_type<tc>, window_params = [{transform_indices = @transform_0, window_bounds = array<i64: 1, 8, 256>}, {pipeline_mode = #tpu.pipeline_mode<synchronous>, transform_indices = @transform_1, window_bounds = array<i64: 16, 8>}, {pipeline_mode = #tpu.pipeline_mode<synchronous>, transform_indices = @transform_2, window_bounds = array<i64: 16, 1>}, {pipeline_mode = #tpu.pipeline_mode<synchronous>, transform_indices = @transform_3, window_bounds = array<i64: 256, 144>}, {pipeline_mode = #tpu.pipeline_mode<synchronous>, transform_indices = @transform_4, window_bounds = array<i64: 256, 144>}, {pipeline_mode = #tpu.pipeline_mode<synchronous>, transform_indices = @transform_5, window_bounds = array<i64: 144, 256>}, {pipeline_mode = #tpu.pipeline_mode<synchronous>, transform_indices = @transform_6, window_bounds = array<i64: 144, 256>}, {pipeline_mode = #tpu.pipeline_mode<synchronous>, transform_indices = @transform_7, window_bounds = array<i64: 16, 144>}, {pipeline_mode = #tpu.pipeline_mode<synchronous>, transform_indices = @transform_8, window_bounds = array<i64: 16, 144>}, {pipeline_mode = #tpu.pipeline_mode<synchronous>, transform_indices = @transform_9, window_bounds = array<i64: 16, 16>}, {pipeline_mode = #tpu.pipeline_mode<synchronous>, transform_indices = @transform_10, window_bounds = array<i64: 16, 16>}, {pipeline_mode = #tpu.pipeline_mode<synchronous>, transform_indices = @transform_11, window_bounds = array<i64: 16, 1>}, {pipeline_mode = #tpu.pipeline_mode<synchronous>, transform_indices = @transform_12, window_bounds = array<i64: 16, 16>}, {pipeline_mode = #tpu.pipeline_mode<synchronous>, transform_indices = @transform_13, window_bounds = array<i64: 16, 1>}, {pipeline_mode = #tpu.pipeline_mode<synchronous>, transform_indices = @transform_14, window_bounds = array<i64: 8, 16>}, {pipeline_mode = #tpu.pipeline_mode<synchronous>, transform_indices = @transform_15, window_bounds = array<i64: 8, 16>}, {pipeline_mode = #tpu.pipeline_mode<synchronous>, transform_indices = @transform_16, window_bounds = array<i64: 8, 16>}, {pipeline_mode = #tpu.pipeline_mode<synchronous>, transform_indices = @transform_17, window_bounds = array<i64: 8, 1>}, {transform_indices = @transform_18, window_bounds = array<i64: 1, 8, 256>}]} {
    %c0 = arith.constant 0 : index
    %c0_0 = arith.constant 0 : index
    %c0_1 = arith.constant 0 : index
    %0 = vector.load %arg1[%c0, %c0_0, %c0_1] : memref<1x8x256xf32, #tpu.memory_space<vmem>>, vector<1x8x256xf32>
    %1 = vector.shape_cast %0 : vector<1x8x256xf32> to vector<8x256xf32>
    %c0_2 = arith.constant 0 : index
    %c0_3 = arith.constant 0 : index
    %2 = vector.load %arg2[%c0_2, %c0_3] : memref<16x8xf32, #tpu.memory_space<vmem>>, vector<16x8xf32>
    %cst = arith.constant dense<0.000000e+00> : vector<16x256xf32>
    %3 = tpu.matmul %2, %1, %cst {dimension_numbers = #tpu.dot_dimension_numbers<[1], [0], [0], [1], [0, 0, 1, 1], [], []>} : vector<16x8xf32>, vector<8x256xf32>, vector<16x256xf32> -> vector<16x256xf32>
    %c0_4 = arith.constant 0 : index
    %c0_5 = arith.constant 0 : index
    %4 = vector.load %arg3[%c0_4, %c0_5] : memref<16x1xf32, #tpu.memory_space<vmem>>, vector<16x1xf32>
    %5 = vector.broadcast %4 : vector<16x1xf32> to vector<16x256xf32>
    %6 = arith.addf %3, %5 : vector<16x256xf32>
    %cst_6 = arith.constant 5.000000e-01 : f32
    %7 = vector.broadcast %cst_6 : f32 to vector<16x256xf32>
    %8 = arith.mulf %7, %6 : vector<16x256xf32>
    %cst_7 = arith.constant 4.471500e-02 : f32
    %9 = vector.broadcast %cst_7 : f32 to vector<16x256xf32>
    %10 = arith.mulf %9, %6 : vector<16x256xf32>
    %11 = arith.mulf %10, %6 : vector<16x256xf32>
    %12 = arith.mulf %11, %6 : vector<16x256xf32>
    %13 = arith.addf %6, %12 : vector<16x256xf32>
    %cst_8 = arith.constant 0.797884583 : f32
    %14 = vector.broadcast %cst_8 : f32 to vector<16x256xf32>
    %15 = arith.mulf %14, %13 : vector<16x256xf32>
    %16 = math.tanh %15 : vector<16x256xf32>
    %cst_9 = arith.constant 1.000000e+00 : f32
    %17 = vector.broadcast %cst_9 : f32 to vector<16x256xf32>
    %18 = arith.addf %17, %16 : vector<16x256xf32>
    %19 = arith.mulf %8, %18 : vector<16x256xf32>
    %20 = arith.truncf %19 : vector<16x256xf32> to vector<16x256xbf16>
    %c0_10 = arith.constant 0 : index
    %c0_11 = arith.constant 0 : index
    %21 = vector.load %arg4[%c0_10, %c0_11] : memref<256x144xbf16, #tpu.memory_space<vmem>>, vector<256x144xbf16>
    %cst_12 = arith.constant dense<0.000000e+00> : vector<16x144xf32>
    %22 = tpu.matmul %20, %21, %cst_12 {dimension_numbers = #tpu.dot_dimension_numbers<[1], [0], [0], [1], [0, 0, 1, 1], [], []>} : vector<16x256xbf16>, vector<256x144xbf16>, vector<16x144xf32> -> vector<16x144xf32>
    %c0_13 = arith.constant 0 : index
    %c0_14 = arith.constant 0 : index
    %23 = vector.load %arg5[%c0_13, %c0_14] : memref<256x144xbf16, #tpu.memory_space<vmem>>, vector<256x144xbf16>
    %cst_15 = arith.constant dense<0.000000e+00> : vector<16x144xf32>
    %24 = tpu.matmul %20, %23, %cst_15 {dimension_numbers = #tpu.dot_dimension_numbers<[1], [0], [0], [1], [0, 0, 1, 1], [], []>} : vector<16x256xbf16>, vector<256x144xbf16>, vector<16x144xf32> -> vector<16x144xf32>
    %c0_16 = arith.constant 0 : index
    %c0_17 = arith.constant 0 : index
    %25 = vector.load %arg8[%c0_16, %c0_17] : memref<16x144xf32, #tpu.memory_space<vmem>>, vector<16x144xf32>
    %c0_18 = arith.constant 0 : index
    %c0_19 = arith.constant 0 : index
    %26 = vector.load %arg9[%c0_18, %c0_19] : memref<16x144xf32, #tpu.memory_space<vmem>>, vector<16x144xf32>
    %27 = arith.mulf %22, %25 : vector<16x144xf32>
    %28 = arith.mulf %24, %26 : vector<16x144xf32>
    %29 = arith.subf %27, %28 : vector<16x144xf32>
    %30 = arith.mulf %22, %26 : vector<16x144xf32>
    %31 = arith.mulf %24, %25 : vector<16x144xf32>
    %32 = arith.addf %30, %31 : vector<16x144xf32>
    %c0_20 = arith.constant 0 : index
    %c0_21 = arith.constant 0 : index
    %33 = vector.load %arg10[%c0_20, %c0_21] : memref<16x16xf32, #tpu.memory_space<vmem>>, vector<16x16xf32>
    %cst_22 = arith.constant dense<0.000000e+00> : vector<16x144xf32>
    %34 = tpu.matmul %33, %22, %cst_22 {dimension_numbers = #tpu.dot_dimension_numbers<[1], [0], [0], [1], [0, 0, 1, 1], [], []>} : vector<16x16xf32>, vector<16x144xf32>, vector<16x144xf32> -> vector<16x144xf32>
    %c0_23 = arith.constant 0 : index
    %c0_24 = arith.constant 0 : index
    %35 = vector.load %arg11[%c0_23, %c0_24] : memref<16x16xf32, #tpu.memory_space<vmem>>, vector<16x16xf32>
    %cst_25 = arith.constant dense<0.000000e+00> : vector<16x144xf32>
    %36 = tpu.matmul %35, %24, %cst_25 {dimension_numbers = #tpu.dot_dimension_numbers<[1], [0], [0], [1], [0, 0, 1, 1], [], []>} : vector<16x16xf32>, vector<16x144xf32>, vector<16x144xf32> -> vector<16x144xf32>
    %37 = arith.addf %34, %36 : vector<16x144xf32>
    %c0_26 = arith.constant 0 : index
    %c0_27 = arith.constant 0 : index
    %38 = vector.load %arg12[%c0_26, %c0_27] : memref<16x1xf32, #tpu.memory_space<vmem>>, vector<16x1xf32>
    %39 = vector.broadcast %38 : vector<16x1xf32> to vector<16x144xf32>
    %40 = arith.addf %37, %39 : vector<16x144xf32>
    %cst_28 = arith.constant 5.000000e-01 : f32
    %41 = vector.broadcast %cst_28 : f32 to vector<16x144xf32>
    %42 = arith.mulf %41, %40 : vector<16x144xf32>
    %cst_29 = arith.constant 4.471500e-02 : f32
    %43 = vector.broadcast %cst_29 : f32 to vector<16x144xf32>
    %44 = arith.mulf %43, %40 : vector<16x144xf32>
    %45 = arith.mulf %44, %40 : vector<16x144xf32>
    %46 = arith.mulf %45, %40 : vector<16x144xf32>
    %47 = arith.addf %40, %46 : vector<16x144xf32>
    %cst_30 = arith.constant 0.797884583 : f32
    %48 = vector.broadcast %cst_30 : f32 to vector<16x144xf32>
    %49 = arith.mulf %48, %47 : vector<16x144xf32>
    %50 = math.tanh %49 : vector<16x144xf32>
    %cst_31 = arith.constant 1.000000e+00 : f32
    %51 = vector.broadcast %cst_31 : f32 to vector<16x144xf32>
    %52 = arith.addf %51, %50 : vector<16x144xf32>
    %53 = arith.mulf %42, %52 : vector<16x144xf32>
    %c0_32 = arith.constant 0 : index
    %c0_33 = arith.constant 0 : index
    %54 = vector.load %arg13[%c0_32, %c0_33] : memref<16x16xf32, #tpu.memory_space<vmem>>, vector<16x16xf32>
    %cst_34 = arith.constant dense<0.000000e+00> : vector<16x144xf32>
    %55 = tpu.matmul %54, %53, %cst_34 {dimension_numbers = #tpu.dot_dimension_numbers<[1], [0], [0], [1], [0, 0, 1, 1], [], []>} : vector<16x16xf32>, vector<16x144xf32>, vector<16x144xf32> -> vector<16x144xf32>
    %c0_35 = arith.constant 0 : index
    %c0_36 = arith.constant 0 : index
    %56 = vector.load %arg14[%c0_35, %c0_36] : memref<16x1xf32, #tpu.memory_space<vmem>>, vector<16x1xf32>
    %57 = vector.broadcast %56 : vector<16x1xf32> to vector<16x144xf32>
    %58 = arith.addf %55, %57 : vector<16x144xf32>
    %c0_37 = arith.constant 0 : index
    %c0_38 = arith.constant 0 : index
    %59 = vector.load %arg15[%c0_37, %c0_38] : memref<8x16xf32, #tpu.memory_space<vmem>>, vector<8x16xf32>
    %cst_39 = arith.constant dense<0.000000e+00> : vector<8x144xf32>
    %60 = tpu.matmul %59, %29, %cst_39 {dimension_numbers = #tpu.dot_dimension_numbers<[1], [0], [0], [1], [0, 0, 1, 1], [], []>} : vector<8x16xf32>, vector<16x144xf32>, vector<8x144xf32> -> vector<8x144xf32>
    %c0_40 = arith.constant 0 : index
    %c0_41 = arith.constant 0 : index
    %61 = vector.load %arg16[%c0_40, %c0_41] : memref<8x16xf32, #tpu.memory_space<vmem>>, vector<8x16xf32>
    %cst_42 = arith.constant dense<0.000000e+00> : vector<8x144xf32>
    %62 = tpu.matmul %61, %58, %cst_42 {dimension_numbers = #tpu.dot_dimension_numbers<[1], [0], [0], [1], [0, 0, 1, 1], [], []>} : vector<8x16xf32>, vector<16x144xf32>, vector<8x144xf32> -> vector<8x144xf32>
    %63 = arith.addf %60, %62 : vector<8x144xf32>
    %c0_43 = arith.constant 0 : index
    %c0_44 = arith.constant 0 : index
    %64 = vector.load %arg15[%c0_43, %c0_44] : memref<8x16xf32, #tpu.memory_space<vmem>>, vector<8x16xf32>
    %cst_45 = arith.constant dense<0.000000e+00> : vector<8x144xf32>
    %65 = tpu.matmul %64, %32, %cst_45 {dimension_numbers = #tpu.dot_dimension_numbers<[1], [0], [0], [1], [0, 0, 1, 1], [], []>} : vector<8x16xf32>, vector<16x144xf32>, vector<8x144xf32> -> vector<8x144xf32>
    %c0_46 = arith.constant 0 : index
    %c0_47 = arith.constant 0 : index
    %66 = vector.load %arg17[%c0_46, %c0_47] : memref<8x16xf32, #tpu.memory_space<vmem>>, vector<8x16xf32>
    %cst_48 = arith.constant dense<0.000000e+00> : vector<8x144xf32>
    %67 = tpu.matmul %66, %58, %cst_48 {dimension_numbers = #tpu.dot_dimension_numbers<[1], [0], [0], [1], [0, 0, 1, 1], [], []>} : vector<8x16xf32>, vector<16x144xf32>, vector<8x144xf32> -> vector<8x144xf32>
    %68 = arith.addf %65, %67 : vector<8x144xf32>
    %69 = arith.truncf %63 : vector<8x144xf32> to vector<8x144xbf16>
    %c0_49 = arith.constant 0 : index
    %c0_50 = arith.constant 0 : index
    %70 = vector.load %arg6[%c0_49, %c0_50] : memref<144x256xbf16, #tpu.memory_space<vmem>>, vector<144x256xbf16>
    %cst_51 = arith.constant dense<0.000000e+00> : vector<8x256xf32>
    %71 = tpu.matmul %69, %70, %cst_51 {dimension_numbers = #tpu.dot_dimension_numbers<[1], [0], [0], [1], [0, 0, 1, 1], [], []>} : vector<8x144xbf16>, vector<144x256xbf16>, vector<8x256xf32> -> vector<8x256xf32>
    %72 = arith.truncf %68 : vector<8x144xf32> to vector<8x144xbf16>
    %c0_52 = arith.constant 0 : index
    %c0_53 = arith.constant 0 : index
    %73 = vector.load %arg7[%c0_52, %c0_53] : memref<144x256xbf16, #tpu.memory_space<vmem>>, vector<144x256xbf16>
    %cst_54 = arith.constant dense<0.000000e+00> : vector<8x256xf32>
    %74 = tpu.matmul %72, %73, %cst_54 {dimension_numbers = #tpu.dot_dimension_numbers<[1], [0], [0], [1], [0, 0, 1, 1], [], []>} : vector<8x144xbf16>, vector<144x256xbf16>, vector<8x256xf32> -> vector<8x256xf32>
    %75 = arith.addf %71, %74 : vector<8x256xf32>
    %c0_55 = arith.constant 0 : index
    %c0_56 = arith.constant 0 : index
    %76 = vector.load %arg18[%c0_55, %c0_56] : memref<8x1xf32, #tpu.memory_space<vmem>>, vector<8x1xf32>
    %77 = vector.broadcast %76 : vector<8x1xf32> to vector<8x256xf32>
    %78 = arith.addf %75, %77 : vector<8x256xf32>
    %c0_57 = arith.constant 0 : index
    %c0_58 = arith.constant 0 : index
    %c0_59 = arith.constant 0 : index
    %79 = vector.load %arg19[%c0_57, %c0_58, %c0_59] : memref<1x8x256xf32, #tpu.memory_space<vmem>>, vector<1x8x256xf32>
    %80 = vector.shape_cast %79 : vector<1x8x256xf32> to vector<8x256xf32>
    %81 = vector.shape_cast %78 : vector<8x256xf32> to vector<1x8x256xf32>
    tpu.vector_store %arg19[%c0_57, %c0_58, %c0_59], %81 {strides = array<i32>} : memref<1x8x256xf32, #tpu.memory_space<vmem>>, vector<1x8x256xf32>,
    return
  }
  func.func @transform_0(%arg0: i32) -> (i32, i32, i32) {
    %c0_i32 = arith.constant 0 : i32
    %c0_i32_0 = arith.constant 0 : i32
    %c0_i32_1 = arith.constant 0 : i32
    return %arg0, %c0_i32, %c0_i32_0 : i32, i32, i32
  }
  func.func @transform_1(%arg0: i32) -> (i32, i32) {
    %c0_i32 = arith.constant 0 : i32
    %c0_i32_0 = arith.constant 0 : i32
    %c0_i32_1 = arith.constant 0 : i32
    return %c0_i32, %c0_i32_0 : i32, i32
  }
  func.func @transform_2(%arg0: i32) -> (i32, i32) {
    %c0_i32 = arith.constant 0 : i32
    %c0_i32_0 = arith.constant 0 : i32
    %c0_i32_1 = arith.constant 0 : i32
    return %c0_i32, %c0_i32_0 : i32, i32
  }
  func.func @transform_3(%arg0: i32) -> (i32, i32) {
    %c0_i32 = arith.constant 0 : i32
    %c0_i32_0 = arith.constant 0 : i32
    %c0_i32_1 = arith.constant 0 : i32
    return %c0_i32, %c0_i32_0 : i32, i32
  }
  func.func @transform_4(%arg0: i32) -> (i32, i32) {
    %c0_i32 = arith.constant 0 : i32
    %c0_i32_0 = arith.constant 0 : i32
    %c0_i32_1 = arith.constant 0 : i32
    return %c0_i32, %c0_i32_0 : i32, i32
  }
  func.func @transform_5(%arg0: i32) -> (i32, i32) {
    %c0_i32 = arith.constant 0 : i32
    %c0_i32_0 = arith.constant 0 : i32
    %c0_i32_1 = arith.constant 0 : i32
    return %c0_i32, %c0_i32_0 : i32, i32
  }
  func.func @transform_6(%arg0: i32) -> (i32, i32) {
    %c0_i32 = arith.constant 0 : i32
    %c0_i32_0 = arith.constant 0 : i32
    %c0_i32_1 = arith.constant 0 : i32
    return %c0_i32, %c0_i32_0 : i32, i32
  }
  func.func @transform_7(%arg0: i32) -> (i32, i32) {
    %c0_i32 = arith.constant 0 : i32
    %c0_i32_0 = arith.constant 0 : i32
    %c0_i32_1 = arith.constant 0 : i32
    return %c0_i32, %c0_i32_0 : i32, i32
  }
  func.func @transform_8(%arg0: i32) -> (i32, i32) {
    %c0_i32 = arith.constant 0 : i32
    %c0_i32_0 = arith.constant 0 : i32
    %c0_i32_1 = arith.constant 0 : i32
    return %c0_i32, %c0_i32_0 : i32, i32
  }
  func.func @transform_9(%arg0: i32) -> (i32, i32) {
    %c0_i32 = arith.constant 0 : i32
    %c0_i32_0 = arith.constant 0 : i32
    %c0_i32_1 = arith.constant 0 : i32
    return %c0_i32, %c0_i32_0 : i32, i32
  }
  func.func @transform_10(%arg0: i32) -> (i32, i32) {
    %c0_i32 = arith.constant 0 : i32
    %c0_i32_0 = arith.constant 0 : i32
    %c0_i32_1 = arith.constant 0 : i32
    return %c0_i32, %c0_i32_0 : i32, i32
  }
  func.func @transform_11(%arg0: i32) -> (i32, i32) {
    %c0_i32 = arith.constant 0 : i32
    %c0_i32_0 = arith.constant 0 : i32
    %c0_i32_1 = arith.constant 0 : i32
    return %c0_i32, %c0_i32_0 : i32, i32
  }
  func.func @transform_12(%arg0: i32) -> (i32, i32) {
    %c0_i32 = arith.constant 0 : i32
    %c0_i32_0 = arith.constant 0 : i32
    %c0_i32_1 = arith.constant 0 : i32
    return %c0_i32, %c0_i32_0 : i32, i32
  }
  func.func @transform_13(%arg0: i32) -> (i32, i32) {
    %c0_i32 = arith.constant 0 : i32
    %c0_i32_0 = arith.constant 0 : i32
    %c0_i32_1 = arith.constant 0 : i32
    return %c0_i32, %c0_i32_0 : i32, i32
  }
  func.func @transform_14(%arg0: i32) -> (i32, i32) {
    %c0_i32 = arith.constant 0 : i32
    %c0_i32_0 = arith.constant 0 : i32
    %c0_i32_1 = arith.constant 0 : i32
    return %c0_i32, %c0_i32_0 : i32, i32
  }
  func.func @transform_15(%arg0: i32) -> (i32, i32) {
    %c0_i32 = arith.constant 0 : i32
    %c0_i32_0 = arith.constant 0 : i32
    %c0_i32_1 = arith.constant 0 : i32
    return %c0_i32, %c0_i32_0 : i32, i32
  }
  func.func @transform_16(%arg0: i32) -> (i32, i32) {
    %c0_i32 = arith.constant 0 : i32
    %c0_i32_0 = arith.constant 0 : i32
    %c0_i32_1 = arith.constant 0 : i32
    return %c0_i32, %c0_i32_0 : i32, i32
  }
  func.func @transform_17(%arg0: i32) -> (i32, i32) {
    %c0_i32 = arith.constant 0 : i32
    %c0_i32_0 = arith.constant 0 : i32
    %c0_i32_1 = arith.constant 0 : i32
    return %c0_i32, %c0_i32_0 : i32, i32
  }
  func.func @transform_18(%arg0: i32) -> (i32, i32, i32) {
    %c0_i32 = arith.constant 0 : i32
    %c0_i32_0 = arith.constant 0 : i32
    %c0_i32_1 = arith.constant 0 : i32
    return %arg0, %c0_i32, %c0_i32_0 : i32, i32, i32
  }
}

</mosaic_0001>

<llo_original>
// kernel: squeeze.3
$region0: #{squeeze.3}
  %s0 = inlined_call_operand.vmem [shape: f32[4,16,9,1], index: 0, kind: input, shape index: {}]
  %s1 = inlined_call_operand.vmem [shape: f32[4,144], index: 1, kind: output, shape index: {}]
  $region1: #{squeeze.3} parent=0
    #allocation0 [shape = 'u8[8192]{0}', space=vmem, size = 0x2000, scoped, tag = 'scoped mem for output reshape']
    %s2 = smov 3
    %v3 = vld [vmem:[%s0] ss:$16 sm:%s2]
    %s4 = smov 12
    %v5 = vld [vmem:[%s0] ss:$16 sm:%s4]
    %vm6 = vcmask 1043458
    %v7 = vsel %vm6, %v5, %v3
    %vm8 = vcmask 72704
    %9 = vst.msk [vmem:[#allocation0] sm:$0xf] %vm8, %v7
    %s10 = scalar_lea.vmem %s0, 14
    %s11 = smov 3
    %v12 = vld [vmem:[%s10] ss:$16 sm:%s11]
    %s13 = scalar_lea.vmem %s0, 14
    %s14 = smov 12
    %v15 = vld [vmem:[%s13] ss:$16 sm:%s14]
    %vm16 = vcmask 1043458
    %v17 = vsel %vm16, %v15, %v12
    %s18 = scalar_lea.vmem %s0, 14
    %s19 = smov 3
    %v20 = vld [vmem:[%s18] ss:$16 sm:%s19]
    %s21 = scalar_lea.vmem %s0, 14
    %s22 = smov 12
    %v23 = vld [vmem:[%s21] ss:$16 sm:%s22]
    %vm24 = vcmask 1043458
    %v25 = vsel %vm24, %v23, %v20
    %vm26 = vcmask 15360
    %v27 = vsel %vm26, %v25, %v17
    %28 = vrot.lane.b32.xlu0 %v27, 126
    %v29 = vpop.permute.xlu0 %28
    %vm30 = vcmask 56320
    %s31 = scalar_lea.vmem [#allocation0], 8
    %32 = vst.msk [vmem:[%s31] sm:$0xf] %vm30, %v29
    %vm33 = vcmask 1048560
    %34 = vst.msk [vmem:[#allocation0] sm:$0xf] %vm33, %v29
    %s35 = scalar_lea.vmem %s0, 13
    %s36 = smov 3
    %v37 = vld [vmem:[%s35] ss:$16 sm:%s36]
    %s38 = scalar_lea.vmem %s0, 13
    %s39 = smov 12
    %v40 = vld [vmem:[%s38] ss:$16 sm:%s39]
    %vm41 = vcmask 1043458
    %v42 = vsel %vm41, %v40, %v37
    %43 = vrot.lane.b32.xlu0 %v42, 117
    %v44 = vpop.permute.xlu0 %43
    %vm45 = vcmask 1032104
    %46 = vst.msk [vmem:[#allocation0] sm:$0xf] %vm45, %v44
    %s47 = scalar_lea.vmem %s0, 12
    %s48 = smov 3
    %v49 = vld [vmem:[%s47] ss:$16 sm:%s48]
    %s50 = scalar_lea.vmem %s0, 12
    %s51 = smov 12
    %v52 = vld [vmem:[%s50] ss:$16 sm:%s51]
    %vm53 = vcmask 1043458
    %v54 = vsel %vm53, %v52, %v49
    %55 = vrot.lane.b32.xlu0 %v54, 108
    %v56 = vpop.permute.xlu0 %55
    %vm57 = vcmask 958304
    %58 = vst.msk [vmem:[#allocation0] sm:$0xf] %vm57, %v56
    %s59 = scalar_lea.vmem %s0, 11
    %s60 = smov 3
    %v61 = vld [vmem:[%s59] ss:$16 sm:%s60]
    %s62 = scalar_lea.vmem %s0, 11
    %s63 = smov 12
    %v64 = vld [vmem:[%s62] ss:$16 sm:%s63]
    %vm65 = vcmask 1043458
    %v66 = vsel %vm65, %v64, %v61
    %67 = vrot.lane.b32.xlu0 %v66, 99
    %v68 = vpop.permute.xlu0 %67
    %vm69 = vcmask 884504
    %70 = vst.msk [vmem:[#allocation0] sm:$0xf] %vm69, %v68
    %s71 = scalar_lea.vmem %s0, 10
    %s72 = smov 3
    %v73 = vld [vmem:[%s71] ss:$16 sm:%s72]
    %s74 = scalar_lea.vmem %s0, 10
    %s75 = smov 12
    %v76 = vld [vmem:[%s74] ss:$16 sm:%s75]
    %vm77 = vcmask 1043458
    %v78 = vsel %vm77, %v76, %v73
    %79 = vrot.lane.b32.xlu0 %v78, 90
    %v80 = vpop.permute.xlu0 %79
    %vm81 = vcmask 810704
    %82 = vst.msk [vmem:[#allocation0] sm:$0xf] %vm81, %v80
    %s83 = scalar_lea.vmem %s0, 9
    %s84 = smov 3
    %v85 = vld [vmem:[%s83] ss:$16 sm:%s84]
    %s86 = scalar_lea.vmem %s0, 9
    %s87 = smov 12
    %v88 = vld [vmem:[%s86] ss:$16 sm:%s87]
    %vm89 = vcmask 1043458
    %v90 = vsel %vm89, %v88, %v85
    %91 = vrot.lane.b32.xlu0 %v90, 81
    %v92 = vpop.permute.xlu0 %91
    %vm93 = vcmask 736904
    %94 = vst.msk [vmem:[#allocation0] sm:$0xf] %vm93, %v92
    %s95 = scalar_lea.vmem %s0, 8
    %s96 = smov 3
    %v97 = vld [vmem:[%s95] ss:$16 sm:%s96]
    %s98 = scalar_lea.vmem %s0, 8
    %s99 = smov 12
    %v100 = vld [vmem:[%s98] ss:$16 sm:%s99]
    %vm101 = vcmask 1043458
    %v102 = vsel %vm101, %v100, %v97
    %103 = vrot.lane.b32.xlu0 %v102, 72
    %v104 = vpop.permute.xlu0 %103
    %vm105 = vcmask 663104
    %106 = vst.msk [vmem:[#allocation0] sm:$0xf] %vm105, %v104
    %s107 = scalar_lea.vmem %s0, 7
    %s108 = smov 3
    %v109 = vld [vmem:[%s107] ss:$16 sm:%s108]
    %s110 = scalar_lea.vmem %s0, 7
    %s111 = smov 12
    %v112 = vld [vmem:[%s110] ss:$16 sm:%s111]
    %vm113 = vcmask 1043458
    %v114 = vsel %vm113, %v112, %v109
    %115 = vrot.lane.b32.xlu0 %v114, 63
    %v116 = vpop.permute.xlu0 %115
    %vm117 = vcmask 589304
    %118 = vst.msk [vmem:[#allocation0] sm:$0xf] %vm117, %v116
    %s119 = scalar_lea.vmem %s0, 6
    %s120 = smov 3
    %v121 = vld [vmem:[%s119] ss:$16 sm:%s120]
    %s122 = scalar_lea.vmem %s0, 6
    %s123 = smov 12
    %v124 = vld [vmem:[%s122] ss:$16 sm:%s123]
    %vm125 = vcmask 1043458
    %v126 = vsel %vm125, %v124, %v121
    %127 = vrot.lane.b32.xlu0 %v126, 54
    %v128 = vpop.permute.xlu0 %127
    %vm129 = vcmask 515504
    %130 = vst.msk [vmem:[#allocation0] sm:$0xf] %vm129, %v128
    %s131 = scalar_lea.vmem %s0, 5
    %s132 = smov 3
    %v133 = vld [vmem:[%s131] ss:$16 sm:%s132]
    %s134 = scalar_lea.vmem %s0, 5
    %s135 = smov 12
    %v136 = vld [vmem:[%s134] ss:$16 sm:%s135]
    %vm137 = vcmask 1043458
    %v138 = vsel %vm137, %v136, %v133
    %139 = vrot.lane.b32.xlu0 %v138, 45
    %v140 = vpop.permute.xlu0 %139
    %vm141 = vcmask 441704
    %142 = vst.msk [vmem:[#allocation0] sm:$0xf] %vm141, %v140
    %s143 = scalar_lea.vmem %s0, 4
    %s144 = smov 3
    %v145 = vld [vmem:[%s143] ss:$16 sm:%s144]
    %s146 = scalar_lea.vmem %s0, 4
    %s147 = smov 12
    %v148 = vld [vmem:[%s146] ss:$16 sm:%s147]
    %vm149 = vcmask 1043458
    %v150 = vsel %vm149, %v148, %v145
    %151 = vrot.lane.b32.xlu0 %v150, 36
    %v152 = vpop.permute.xlu0 %151
    %vm153 = vcmask 367904
    %154 = vst.msk [vmem:[#allocation0] sm:$0xf] %vm153, %v152
    %s155 = scalar_lea.vmem %s0, 3
    %s156 = smov 3
    %v157 = vld [vmem:[%s155] ss:$16 sm:%s156]
    %s158 = scalar_lea.vmem %s0, 3
    %s159 = smov 12
    %v160 = vld [vmem:[%s158] ss:$16 sm:%s159]
    %vm161 = vcmask 1043458
    %v162 = vsel %vm161, %v160, %v157
    %163 = vrot.lane.b32.xlu0 %v162, 27
    %v164 = vpop.permute.xlu0 %163
    %vm165 = vcmask 294104
    %166 = vst.msk [vmem:[#allocation0] sm:$0xf] %vm165, %v164
    %s167 = scalar_lea.vmem %s0, 2
    %s168 = smov 3
    %v169 = vld [vmem:[%s167] ss:$16 sm:%s168]
    %s170 = scalar_lea.vmem %s0, 2
    %s171 = smov 12
    %v172 = vld [vmem:[%s170] ss:$16 sm:%s171]
    %vm173 = vcmask 1043458
    %v174 = vsel %vm173, %v172, %v169
    %175 = vrot.lane.b32.xlu0 %v174, 18
    %v176 = vpop.permute.xlu0 %175
    %vm177 = vcmask 220304
    %178 = vst.msk [vmem:[#allocation0] sm:$0xf] %vm177, %v176
    %s179 = scalar_lea.vmem %s0, 1
    %s180 = smov 3
    %v181 = vld [vmem:[%s179] ss:$16 sm:%s180]
    %s182 = scalar_lea.vmem %s0, 1
    %s183 = smov 12
    %v184 = vld [vmem:[%s182] ss:$16 sm:%s183]
    %vm185 = vcmask 1043458
    %v186 = vsel %vm185, %v184, %v181
    %187 = vrot.lane.b32.xlu0 %v186, 9
    %v188 = vpop.permute.xlu0 %187
    %vm189 = vcmask 146504
    %190 = vst.msk [vmem:[#allocation0] sm:$0xf] %vm189, %v188
    %s191 = scalar_lea.vmem %s0, 15
    %s192 = smov 3
    %v193 = vld [vmem:[%s191] ss:$16 sm:%s192]
    %s194 = scalar_lea.vmem %s0, 15
    %s195 = smov 12
    %v196 = vld [vmem:[%s194] ss:$16 sm:%s195]
    %vm197 = vcmask 1043458
    %v198 = vsel %vm197, %v196, %v193
    %199 = vrot.lane.b32.xlu0 %v198, 7
    %v200 = vpop.permute.xlu0 %199
    %vm201 = vcmask 130104
    %s202 = scalar_lea.vmem [#allocation0], 8
    %203 = vst.msk [vmem:[%s202] sm:$0xf] %vm201, %v200
    %s205 = ssub.s32 16, 1
    %v206 = vld [vmem:[#allocation0] sm:%s205]
    %s208 = ssub.s32 16, 1
    %209 = vst [vmem:[%s1] sm:%s208] %v206
    %s210 = scalar_lea.vmem [#allocation0], 8
    %v211 = vld [vmem:[%s210] sm:%s205]
    %s213 = ssub.s32 16, 1
    %s214 = scalar_lea.vmem %s1, 4
    %215 = vst [vmem:[%s214] sm:%s213] %v211

// kernel: fourier_filter_block.1
$region0: #{fourier_filter_block.1}
  #allocation0 [shape = 'u32[]', space=smem, size = 0x4, offset = 0x4, fixed_abs, tag = 'smem constant byte address 0x4 - core index']
  #allocation1 [shape = 'u32[72,128]{1,0:T(1,128)}', space=vmem, size = 0x9000, scoped, tag = 'internal scratch']
  %s0 = inlined_call_operand.vmem [shape: f32[2,8,256], index: 0, kind: input, shape index: {}]
  %s1 = inlined_call_operand.vmem [shape: f32[16,8], index: 1, kind: input, shape index: {}]
  %s2 = inlined_call_operand.vmem [shape: f32[16,1], index: 2, kind: input, shape index: {}]
  %s3 = inlined_call_operand.vmem [shape: bf16[256,144], index: 3, kind: input, shape index: {}]
  %s4 = inlined_call_operand.vmem [shape: bf16[256,144], index: 4, kind: input, shape index: {}]
  %s5 = inlined_call_operand.vmem [shape: bf16[144,256], index: 5, kind: input, shape index: {}]
  %s6 = inlined_call_operand.vmem [shape: bf16[144,256], index: 6, kind: input, shape index: {}]
  %s7 = inlined_call_operand.vmem [shape: f32[16,144], index: 7, kind: input, shape index: {}]
  %s8 = inlined_call_operand.vmem [shape: f32[16,144], index: 8, kind: input, shape index: {}]
  %s9 = inlined_call_operand.vmem [shape: f32[16,16], index: 9, kind: input, shape index: {}]
  %s10 = inlined_call_operand.vmem [shape: f32[16,16], index: 10, kind: input, shape index: {}]
  %s11 = inlined_call_operand.vmem [shape: f32[16,1], index: 11, kind: input, shape index: {}]
  %s12 = inlined_call_operand.vmem [shape: f32[16,16], index: 12, kind: input, shape index: {}]
  %s13 = inlined_call_operand.vmem [shape: f32[16,1], index: 13, kind: input, shape index: {}]
  %s14 = inlined_call_operand.vmem [shape: f32[8,16], index: 14, kind: input, shape index: {}]
  %s15 = inlined_call_operand.vmem [shape: f32[8,16], index: 15, kind: input, shape index: {}]
  %s16 = inlined_call_operand.vmem [shape: f32[8,16], index: 16, kind: input, shape index: {}]
  %s17 = inlined_call_operand.vmem [shape: f32[8,1], index: 17, kind: input, shape index: {}]
  %s18 = inlined_call_operand.vmem [shape: f32[2,8,256], index: 18, kind: output, shape index: {}]
  %s19 = sld [smem:[#allocation0]]
  $region105: #{fourier_filter_block.1} parent=0
    _
  %s21 = ssub.s32 1, %s19
  %s22 = scalar_select 0, %s21, %s19
  loop: start=0, step=1, limit=4
  $region2: #{fourier_filter_block.1} parent=0 // loop_pre_header
    _
  $region3: #{fourier_filter_block.1} parent=0 // loop_header
    %s24 = sphi 0, %s28
    %p25 = scmp.ge.s32.totalorder %s24, 4
    %s34 = sphi 0, %s36
    %s37 = sphi 0, %s34
    %s38 = sphi 0, %s37
    %s54 = sphi 0, %s38
    %s58 = sphi 0, %s58
    %s60 = sphi 0, %s58
    %s61 = sphi 0, %s60
    %s75 = sphi 0, %s61
    %s79 = sphi 0, %s79
    %s81 = sphi 0, %s79
    %s82 = sphi 0, %s81
    %s96 = sphi 0, %s82
    %s100 = sphi 0, %s100
    %s102 = sphi 0, %s100
    %s103 = sphi 0, %s102
    %s117 = sphi 0, %s103
    %s121 = sphi 0, %s121
    %s123 = sphi 0, %s121
    %s124 = sphi 0, %s123
    %s138 = sphi 0, %s124
    %s142 = sphi 0, %s142
    %s144 = sphi 0, %s142
    %s145 = sphi 0, %s144
    %s159 = sphi 0, %s145
    %s163 = sphi 0, %s163
    %s165 = sphi 0, %s163
    %s166 = sphi 0, %s165
    %s180 = sphi 0, %s166
    %s184 = sphi 0, %s184
    %s186 = sphi 0, %s184
    %s187 = sphi 0, %s186
    %s201 = sphi 0, %s187
    %s205 = sphi 0, %s205
    %s207 = sphi 0, %s205
    %s208 = sphi 0, %s207
    %s222 = sphi 0, %s208
    %s226 = sphi 0, %s226
    %s228 = sphi 0, %s226
    %s229 = sphi 0, %s228
    %s243 = sphi 0, %s229
    %s247 = sphi 0, %s247
    %s249 = sphi 0, %s247
    %s250 = sphi 0, %s249
    %s264 = sphi 0, %s250
    %s268 = sphi 0, %s268
    %s270 = sphi 0, %s268
    %s271 = sphi 0, %s270
    %s285 = sphi 0, %s271
    %s289 = sphi 0, %s289
    %s291 = sphi 0, %s289
    %s292 = sphi 0, %s291
    %s306 = sphi 0, %s292
    %s310 = sphi 0, %s310
    %s312 = sphi 0, %s310
    %s313 = sphi 0, %s312
    %s327 = sphi 0, %s313
    %s331 = sphi 0, %s331
    %s333 = sphi 0, %s331
    %s334 = sphi 0, %s333
    %s348 = sphi 0, %s334
    %s352 = sphi 0, %s352
    %s354 = sphi 0, %s352
    %s355 = sphi 0, %s354
    %s369 = sphi 0, %s355
    %s373 = sphi 0, %s373
    %s375 = sphi 0, %s373
    %s376 = sphi 0, %s375
    %s390 = sphi 0, %s376
    %s394 = sphi 0, %s394
    %s396 = sphi 0, %s394
    %s397 = sphi 0, %s396
    %s411 = sphi 0, %s397
    %s417 = sphi 0, %s419
    %s420 = sphi 0, %s417
    %s421 = sphi 0, %s420
    %s437 = sphi 0, %s421
  $region4: #{fourier_filter_block.1} parent=0 // loop_header_branch
    %27 = sbr.rel (%p25) target = $region8
  $region5: #{fourier_filter_block.1} parent=0 // loop_body
    %s29 = ssub.s32 %s24, 1
    %s30 = ssub.s32 %s24, 2
    %s31 = sadd.s32 %s24, 1
    %s32 = ssub.s32 %s24, %s31
    %p33 = scmp.eq.s32.totalorder %s32, 0
    %s35 = sadd.s32 %s34, 1
    %s36 = scalar_select %p33, %s34, %s35
    %p39 = pneg %p33
    %p40 = scmp.eq.s32.totalorder %s24, 1
    %p41 = por %p39, %p40
    %p42 = scmp.ne.s32.totalorder %s34, %s37
    %p43 = scmp.eq.s32.totalorder %s24, 0
    %p44 = por %p42, %p43
    %p45 = scmp.ne.s32.totalorder %s34, %s37
    %p46 = scmp.eq.s32.totalorder %s29, 1
    %p47 = por %p45, %p46
    %p48 = scmp.ne.s32.totalorder %s37, %s38
    %p49 = scmp.eq.s32.totalorder %s29, 0
    %p50 = por %p48, %p49
    %p51 = scmp.ne.s32.totalorder %s37, %s38
    %p52 = scmp.eq.s32.totalorder %s30, 1
    %p53 = por %p51, %p52
    %p55 = scmp.ne.s32.totalorder %s38, %s54
    %p56 = scmp.eq.s32.totalorder %s30, 0
    %p57 = por %p55, %p56
    %s59 = sadd.s32 %s58, 1
    %p62 = scmp.eq.s32.totalorder %s24, 1
    %p63 = scmp.ne.s32.totalorder %s58, %s60
    %p64 = scmp.eq.s32.totalorder %s24, 0
    %p65 = por %p63, %p64
    %p66 = scmp.ne.s32.totalorder %s58, %s60
    %p67 = scmp.eq.s32.totalorder %s29, 1
    %p68 = por %p66, %p67
    %p69 = scmp.ne.s32.totalorder %s60, %s61
    %p70 = scmp.eq.s32.totalorder %s29, 0
    %p71 = por %p69, %p70
    %p72 = scmp.ne.s32.totalorder %s60, %s61
    %p73 = scmp.eq.s32.totalorder %s30, 1
    %p74 = por %p72, %p73
    %p76 = scmp.ne.s32.totalorder %s61, %s75
    %p77 = scmp.eq.s32.totalorder %s30, 0
    %p78 = por %p76, %p77
    %s80 = sadd.s32 %s79, 1
    %p83 = scmp.eq.s32.totalorder %s24, 1
    %p84 = scmp.ne.s32.totalorder %s79, %s81
    %p85 = scmp.eq.s32.totalorder %s24, 0
    %p86 = por %p84, %p85
    %p87 = scmp.ne.s32.totalorder %s79, %s81
    %p88 = scmp.eq.s32.totalorder %s29, 1
    %p89 = por %p87, %p88
    %p90 = scmp.ne.s32.totalorder %s81, %s82
    %p91 = scmp.eq.s32.totalorder %s29, 0
    %p92 = por %p90, %p91
    %p93 = scmp.ne.s32.totalorder %s81, %s82
    %p94 = scmp.eq.s32.totalorder %s30, 1
    %p95 = por %p93, %p94
    %p97 = scmp.ne.s32.totalorder %s82, %s96
    %p98 = scmp.eq.s32.totalorder %s30, 0
    %p99 = por %p97, %p98
    %s101 = sadd.s32 %s100, 1
    %p104 = scmp.eq.s32.totalorder %s24, 1
    %p105 = scmp.ne.s32.totalorder %s100, %s102
    %p106 = scmp.eq.s32.totalorder %s24, 0
    %p107 = por %p105, %p106
    %p108 = scmp.ne.s32.totalorder %s100, %s102
    %p109 = scmp.eq.s32.totalorder %s29, 1
    %p110 = por %p108, %p109
    %p111 = scmp.ne.s32.totalorder %s102, %s103
    %p112 = scmp.eq.s32.totalorder %s29, 0
    %p113 = por %p111, %p112
    %p114 = scmp.ne.s32.totalorder %s102, %s103
    %p115 = scmp.eq.s32.totalorder %s30, 1
    %p116 = por %p114, %p115
    %p118 = scmp.ne.s32.totalorder %s103, %s117
    %p119 = scmp.eq.s32.totalorder %s30, 0
    %p120 = por %p118, %p119
    %s122 = sadd.s32 %s121, 1
    %p125 = scmp.eq.s32.totalorder %s24, 1
    %p126 = scmp.ne.s32.totalorder %s121, %s123
    %p127 = scmp.eq.s32.totalorder %s24, 0
    %p128 = por %p126, %p127
    %p129 = scmp.ne.s32.totalorder %s121, %s123
    %p130 = scmp.eq.s32.totalorder %s29, 1
    %p131 = por %p129, %p130
    %p132 = scmp.ne.s32.totalorder %s123, %s124
    %p133 = scmp.eq.s32.totalorder %s29, 0
    %p134 = por %p132, %p133
    %p135 = scmp.ne.s32.totalorder %s123, %s124
    %p136 = scmp.eq.s32.totalorder %s30, 1
    %p137 = por %p135, %p136
    %p139 = scmp.ne.s32.totalorder %s124, %s138
    %p140 = scmp.eq.s32.totalorder %s30, 0
    %p141 = por %p139, %p140
    %s143 = sadd.s32 %s142, 1
    %p146 = scmp.eq.s32.totalorder %s24, 1
    %p147 = scmp.ne.s32.totalorder %s142, %s144
    %p148 = scmp.eq.s32.totalorder %s24, 0
    %p149 = por %p147, %p148
    %p150 = scmp.ne.s32.totalorder %s142, %s144
    %p151 = scmp.eq.s32.totalorder %s29, 1
    %p152 = por %p150, %p151
    %p153 = scmp.ne.s32.totalorder %s144, %s145
    %p154 = scmp.eq.s32.totalorder %s29, 0
    %p155 = por %p153, %p154
    %p156 = scmp.ne.s32.totalorder %s144, %s145
    %p157 = scmp.eq.s32.totalorder %s30, 1
    %p158 = por %p156, %p157
    %p160 = scmp.ne.s32.totalorder %s145, %s159
    %p161 = scmp.eq.s32.totalorder %s30, 0
    %p162 = por %p160, %p161
    %s164 = sadd.s32 %s163, 1
    %p167 = scmp.eq.s32.totalorder %s24, 1
    %p168 = scmp.ne.s32.totalorder %s163, %s165
    %p169 = scmp.eq.s32.totalorder %s24, 0
    %p170 = por %p168, %p169
    %p171 = scmp.ne.s32.totalorder %s163, %s165
    %p172 = scmp.eq.s32.totalorder %s29, 1
    %p173 = por %p171, %p172
    %p174 = scmp.ne.s32.totalorder %s165, %s166
    %p175 = scmp.eq.s32.totalorder %s29, 0
    %p176 = por %p174, %p175
    %p177 = scmp.ne.s32.totalorder %s165, %s166
    %p178 = scmp.eq.s32.totalorder %s30, 1
    %p179 = por %p177, %p178
    %p181 = scmp.ne.s32.totalorder %s166, %s180
    %p182 = scmp.eq.s32.totalorder %s30, 0
    %p183 = por %p181, %p182
    %s185 = sadd.s32 %s184, 1
    %p188 = scmp.eq.s32.totalorder %s24, 1
    %p189 = scmp.ne.s32.totalorder %s184, %s186
    %p190 = scmp.eq.s32.totalorder %s24, 0
    %p191 = por %p189, %p190
    %p192 = scmp.ne.s32.totalorder %s184, %s186
    %p193 = scmp.eq.s32.totalorder %s29, 1
    %p194 = por %p192, %p193
    %p195 = scmp.ne.s32.totalorder %s186, %s187
    %p196 = scmp.eq.s32.totalorder %s29, 0
    %p197 = por %p195, %p196
    %p198 = scmp.ne.s32.totalorder %s186, %s187
    %p199 = scmp.eq.s32.totalorder %s30, 1
    %p200 = por %p198, %p199
    %p202 = scmp.ne.s32.totalorder %s187, %s201
    %p203 = scmp.eq.s32.totalorder %s30, 0
    %p204 = por %p202, %p203
    %s206 = sadd.s32 %s205, 1
    %p209 = scmp.eq.s32.totalorder %s24, 1
    %p210 = scmp.ne.s32.totalorder %s205, %s207
    %p211 = scmp.eq.s32.totalorder %s24, 0
    %p212 = por %p210, %p211
    %p213 = scmp.ne.s32.totalorder %s205, %s207
    %p214 = scmp.eq.s32.totalorder %s29, 1
    %p215 = por %p213, %p214
    %p216 = scmp.ne.s32.totalorder %s207, %s208
    %p217 = scmp.eq.s32.totalorder %s29, 0
    %p218 = por %p216, %p217
    %p219 = scmp.ne.s32.totalorder %s207, %s208
    %p220 = scmp.eq.s32.totalorder %s30, 1
    %p221 = por %p219, %p220
    %p223 = scmp.ne.s32.totalorder %s208, %s222
    %p224 = scmp.eq.s32.totalorder %s30, 0
    %p225 = por %p223, %p224
    %s227 = sadd.s32 %s226, 1
    %p230 = scmp.eq.s32.totalorder %s24, 1
    %p231 = scmp.ne.s32.totalorder %s226, %s228
    %p232 = scmp.eq.s32.totalorder %s24, 0
    %p233 = por %p231, %p232
    %p234 = scmp.ne.s32.totalorder %s226, %s228
    %p235 = scmp.eq.s32.totalorder %s29, 1
    %p236 = por %p234, %p235
    %p237 = scmp.ne.s32.totalorder %s228, %s229
    %p238 = scmp.eq.s32.totalorder %s29, 0
    %p239 = por %p237, %p238
    %p240 = scmp.ne.s32.totalorder %s228, %s229
    %p241 = scmp.eq.s32.totalorder %s30, 1
    %p242 = por %p240, %p241
    %p244 = scmp.ne.s32.totalorder %s229, %s243
    %p245 = scmp.eq.s32.totalorder %s30, 0
    %p246 = por %p244, %p245
    %s248 = sadd.s32 %s247, 1
    %p251 = scmp.eq.s32.totalorder %s24, 1
    %p252 = scmp.ne.s32.totalorder %s247, %s249
    %p253 = scmp.eq.s32.totalorder %s24, 0
    %p254 = por %p252, %p253
    %p255 = scmp.ne.s32.totalorder %s247, %s249
    %p256 = scmp.eq.s32.totalorder %s29, 1
    %p257 = por %p255, %p256
    %p258 = scmp.ne.s32.totalorder %s249, %s250
    %p259 = scmp.eq.s32.totalorder %s29, 0
    %p260 = por %p258, %p259
    %p261 = scmp.ne.s32.totalorder %s249, %s250
    %p262 = scmp.eq.s32.totalorder %s30, 1
    %p263 = por %p261, %p262
    %p265 = scmp.ne.s32.totalorder %s250, %s264
    %p266 = scmp.eq.s32.totalorder %s30, 0
    %p267 = por %p265, %p266
    %s269 = sadd.s32 %s268, 1
    %p272 = scmp.eq.s32.totalorder %s24, 1
    %p273 = scmp.ne.s32.totalorder %s268, %s270
    %p274 = scmp.eq.s32.totalorder %s24, 0
    %p275 = por %p273, %p274
    %p276 = scmp.ne.s32.totalorder %s268, %s270
    %p277 = scmp.eq.s32.totalorder %s29, 1
    %p278 = por %p276, %p277
    %p279 = scmp.ne.s32.totalorder %s270, %s271
    %p280 = scmp.eq.s32.totalorder %s29, 0
    %p281 = por %p279, %p280
    %p282 = scmp.ne.s32.totalorder %s270, %s271
    %p283 = scmp.eq.s32.totalorder %s30, 1
    %p284 = por %p282, %p283
    %p286 = scmp.ne.s32.totalorder %s271, %s285
    %p287 = scmp.eq.s32.totalorder %s30, 0
    %p288 = por %p286, %p287
    %s290 = sadd.s32 %s289, 1
    %p293 = scmp.eq.s32.totalorder %s24, 1
    %p294 = scmp.ne.s32.totalorder %s289, %s291
    %p295 = scmp.eq.s32.totalorder %s24, 0
    %p296 = por %p294, %p295
    %p297 = scmp.ne.s32.totalorder %s289, %s291
    %p298 = scmp.eq.s32.totalorder %s29, 1
    %p299 = por %p297, %p298
    %p300 = scmp.ne.s32.totalorder %s291, %s292
    %p301 = scmp.eq.s32.totalorder %s29, 0
    %p302 = por %p300, %p301
    %p303 = scmp.ne.s32.totalorder %s291, %s292
    %p304 = scmp.eq.s32.totalorder %s30, 1
    %p305 = por %p303, %p304
    %p307 = scmp.ne.s32.totalorder %s292, %s306
    %p308 = scmp.eq.s32.totalorder %s30, 0
    %p309 = por %p307, %p308
    %s311 = sadd.s32 %s310, 1
    %p314 = scmp.eq.s32.totalorder %s24, 1
    %p315 = scmp.ne.s32.totalorder %s310, %s312
    %p316 = scmp.eq.s32.totalorder %s24, 0
    %p317 = por %p315, %p316
    %p318 = scmp.ne.s32.totalorder %s310, %s312
    %p319 = scmp.eq.s32.totalorder %s29, 1
    %p320 = por %p318, %p319
    %p321 = scmp.ne.s32.totalorder %s312, %s313
    %p322 = scmp.eq.s32.totalorder %s29, 0
    %p323 = por %p321, %p322
    %p324 = scmp.ne.s32.totalorder %s312, %s313
    %p325 = scmp.eq.s32.totalorder %s30, 1
    %p326 = por %p324, %p325
    %p328 = scmp.ne.s32.totalorder %s313, %s327
    %p329 = scmp.eq.s32.totalorder %s30, 0
    %p330 = por %p328, %p329
    %s332 = sadd.s32 %s331, 1
    %p335 = scmp.eq.s32.totalorder %s24, 1
    %p336 = scmp.ne.s32.totalorder %s331, %s333
    %p337 = scmp.eq.s32.totalorder %s24, 0
    %p338 = por %p336, %p337
    %p339 = scmp.ne.s32.totalorder %s331, %s333
    %p340 = scmp.eq.s32.totalorder %s29, 1
    %p341 = por %p339, %p340
    %p342 = scmp.ne.s32.totalorder %s333, %s334
    %p343 = scmp.eq.s32.totalorder %s29, 0
    %p344 = por %p342, %p343
    %p345 = scmp.ne.s32.totalorder %s333, %s334
    %p346 = scmp.eq.s32.totalorder %s30, 1
    %p347 = por %p345, %p346
    %p349 = scmp.ne.s32.totalorder %s334, %s348
    %p350 = scmp.eq.s32.totalorder %s30, 0
    %p351 = por %p349, %p350
    %s353 = sadd.s32 %s352, 1
    %p356 = scmp.eq.s32.totalorder %s24, 1
    %p357 = scmp.ne.s32.totalorder %s352, %s354
    %p358 = scmp.eq.s32.totalorder %s24, 0
    %p359 = por %p357, %p358
    %p360 = scmp.ne.s32.totalorder %s352, %s354
    %p361 = scmp.eq.s32.totalorder %s29, 1
    %p362 = por %p360, %p361
    %p363 = scmp.ne.s32.totalorder %s354, %s355
    %p364 = scmp.eq.s32.totalorder %s29, 0
    %p365 = por %p363, %p364
    %p366 = scmp.ne.s32.totalorder %s354, %s355
    %p367 = scmp.eq.s32.totalorder %s30, 1
    %p368 = por %p366, %p367
    %p370 = scmp.ne.s32.totalorder %s355, %s369
    %p371 = scmp.eq.s32.totalorder %s30, 0
    %p372 = por %p370, %p371
    %s374 = sadd.s32 %s373, 1
    %p377 = scmp.eq.s32.totalorder %s24, 1
    %p378 = scmp.ne.s32.totalorder %s373, %s375
    %p379 = scmp.eq.s32.totalorder %s24, 0
    %p380 = por %p378, %p379
    %p381 = scmp.ne.s32.totalorder %s373, %s375
    %p382 = scmp.eq.s32.totalorder %s29, 1
    %p383 = por %p381, %p382
    %p384 = scmp.ne.s32.totalorder %s375, %s376
    %p385 = scmp.eq.s32.totalorder %s29, 0
    %p386 = por %p384, %p385
    %p387 = scmp.ne.s32.totalorder %s375, %s376
    %p388 = scmp.eq.s32.totalorder %s30, 1
    %p389 = por %p387, %p388
    %p391 = scmp.ne.s32.totalorder %s376, %s390
    %p392 = scmp.eq.s32.totalorder %s30, 0
    %p393 = por %p391, %p392
    %s395 = sadd.s32 %s394, 1
    %p398 = scmp.eq.s32.totalorder %s24, 1
    %p399 = scmp.ne.s32.totalorder %s394, %s396
    %p400 = scmp.eq.s32.totalorder %s24, 0
    %p401 = por %p399, %p400
    %p402 = scmp.ne.s32.totalorder %s394, %s396
    %p403 = scmp.eq.s32.totalorder %s29, 1
    %p404 = por %p402, %p403
    %p405 = scmp.ne.s32.totalorder %s396, %s397
    %p406 = scmp.eq.s32.totalorder %s29, 0
    %p407 = por %p405, %p406
    %p408 = scmp.ne.s32.totalorder %s396, %s397
    %p409 = scmp.eq.s32.totalorder %s30, 1
    %p410 = por %p408, %p409
    %p412 = scmp.ne.s32.totalorder %s397, %s411
    %p413 = scmp.eq.s32.totalorder %s30, 0
    %p414 = por %p412, %p413
    %s415 = ssub.s32 %s24, %s31
    %p416 = scmp.eq.s32.totalorder %s415, 0
    %s418 = sadd.s32 %s417, 1
    %s419 = scalar_select %p416, %s417, %s418
    %p422 = pneg %p416
    %p423 = scmp.eq.s32.totalorder %s24, 1
    %p424 = por %p422, %p423
    %p425 = scmp.ne.s32.totalorder %s417, %s420
    %p426 = scmp.eq.s32.totalorder %s24, 0
    %p427 = por %p425, %p426
    %p428 = scmp.ne.s32.totalorder %s417, %s420
    %p429 = scmp.eq.s32.totalorder %s29, 1
    %p430 = por %p428, %p429
    %p431 = scmp.ne.s32.totalorder %s420, %s421
    %p432 = scmp.eq.s32.totalorder %s29, 0
    %p433 = por %p431, %p432
    %p434 = scmp.ne.s32.totalorder %s420, %s421
    %p435 = scmp.eq.s32.totalorder %s30, 1
    %p436 = por %p434, %p435
    %p438 = scmp.ne.s32.totalorder %s421, %s437
    %p439 = scmp.eq.s32.totalorder %s30, 0
    %p440 = por %p438, %p439
    %p441 = scmp.le.s32.totalorder 1, %s24
    %p442 = scmp.lt.s32.totalorder %s24, 3
    %p443 = pnand %p441, %p442
    %p444 = pneg %p443
    // Predicated region
    $region9: #{fourier_filter_block.1} parent=5 // pred_check
      _
    $region10: #{fourier_filter_block.1} parent=5 // pred_check_branch
      %446 = sbr.rel (%p443) target = $region12
    $region11: #{fourier_filter_block.1} parent=5 // pred_region
      %s447 = ssub.s32 %s24, 1
      // Predicated region
      $region13: #{fourier_filter_block.1} parent=11 // pred_check
        %p448 = pneg %p71
      $region14: #{fourier_filter_block.1} parent=11 // pred_check_branch
        %450 = sbr.rel (%p448) target = $region16
      $region15: #{fourier_filter_block.1} parent=11 // pred_region
        _
      $region16: #{fourier_filter_block.1} parent=11 // pred_fallthru
        _
      // Predicated region
      $region17: #{fourier_filter_block.1} parent=11 // pred_check
        %p451 = pneg %p92
      $region18: #{fourier_filter_block.1} parent=11 // pred_check_branch
        %453 = sbr.rel (%p451) target = $region20
      $region19: #{fourier_filter_block.1} parent=11 // pred_region
        _
      $region20: #{fourier_filter_block.1} parent=11 // pred_fallthru
        _
      // Predicated region
      $region21: #{fourier_filter_block.1} parent=11 // pred_check
        %p454 = pneg %p113
      $region22: #{fourier_filter_block.1} parent=11 // pred_check_branch
        %456 = sbr.rel (%p454) target = $region24
      $region23: #{fourier_filter_block.1} parent=11 // pred_region
        _
      $region24: #{fourier_filter_block.1} parent=11 // pred_fallthru
        _
      // Predicated region
      $region25: #{fourier_filter_block.1} parent=11 // pred_check
        %p457 = pneg %p134
      $region26: #{fourier_filter_block.1} parent=11 // pred_check_branch
        %459 = sbr.rel (%p457) target = $region28
      $region27: #{fourier_filter_block.1} parent=11 // pred_region
        _
      $region28: #{fourier_filter_block.1} parent=11 // pred_fallthru
        _
      // Predicated region
      $region29: #{fourier_filter_block.1} parent=11 // pred_check
        %p460 = pneg %p155
      $region30: #{fourier_filter_block.1} parent=11 // pred_check_branch
        %462 = sbr.rel (%p460) target = $region32
      $region31: #{fourier_filter_block.1} parent=11 // pred_region
        _
      $region32: #{fourier_filter_block.1} parent=11 // pred_fallthru
        _
      // Predicated region
      $region33: #{fourier_filter_block.1} parent=11 // pred_check
        %p463 = pneg %p176
      $region34: #{fourier_filter_block.1} parent=11 // pred_check_branch
        %465 = sbr.rel (%p463) target = $region36
      $region35: #{fourier_filter_block.1} parent=11 // pred_region
        _
      $region36: #{fourier_filter_block.1} parent=11 // pred_fallthru
        _
      // Predicated region
      $region37: #{fourier_filter_block.1} parent=11 // pred_check
        %p466 = pneg %p197
      $region38: #{fourier_filter_block.1} parent=11 // pred_check_branch
        %468 = sbr.rel (%p466) target = $region40
      $region39: #{fourier_filter_block.1} parent=11 // pred_region
        _
      $region40: #{fourier_filter_block.1} parent=11 // pred_fallthru
        _
      // Predicated region
      $region41: #{fourier_filter_block.1} parent=11 // pred_check
        %p469 = pneg %p218
      $region42: #{fourier_filter_block.1} parent=11 // pred_check_branch
        %471 = sbr.rel (%p469) target = $region44
      $region43: #{fourier_filter_block.1} parent=11 // pred_region
        _
      $region44: #{fourier_filter_block.1} parent=11 // pred_fallthru
        _
      // Predicated region
      $region45: #{fourier_filter_block.1} parent=11 // pred_check
        %p472 = pneg %p239
      $region46: #{fourier_filter_block.1} parent=11 // pred_check_branch
        %474 = sbr.rel (%p472) target = $region48
      $region47: #{fourier_filter_block.1} parent=11 // pred_region
        _
      $region48: #{fourier_filter_block.1} parent=11 // pred_fallthru
        _
      // Predicated region
      $region49: #{fourier_filter_block.1} parent=11 // pred_check
        %p475 = pneg %p260
      $region50: #{fourier_filter_block.1} parent=11 // pred_check_branch
        %477 = sbr.rel (%p475) target = $region52
      $region51: #{fourier_filter_block.1} parent=11 // pred_region
        _
      $region52: #{fourier_filter_block.1} parent=11 // pred_fallthru
        _
      // Predicated region
      $region53: #{fourier_filter_block.1} parent=11 // pred_check
        %p478 = pneg %p281
      $region54: #{fourier_filter_block.1} parent=11 // pred_check_branch
        %480 = sbr.rel (%p478) target = $region56
      $region55: #{fourier_filter_block.1} parent=11 // pred_region
        _
      $region56: #{fourier_filter_block.1} parent=11 // pred_fallthru
        _
      // Predicated region
      $region57: #{fourier_filter_block.1} parent=11 // pred_check
        %p481 = pneg %p302
      $region58: #{fourier_filter_block.1} parent=11 // pred_check_branch
        %483 = sbr.rel (%p481) target = $region60
      $region59: #{fourier_filter_block.1} parent=11 // pred_region
        _
      $region60: #{fourier_filter_block.1} parent=11 // pred_fallthru
        _
      // Predicated region
      $region61: #{fourier_filter_block.1} parent=11 // pred_check
        %p484 = pneg %p323
      $region62: #{fourier_filter_block.1} parent=11 // pred_check_branch
        %486 = sbr.rel (%p484) target = $region64
      $region63: #{fourier_filter_block.1} parent=11 // pred_region
        _
      $region64: #{fourier_filter_block.1} parent=11 // pred_fallthru
        _
      // Predicated region
      $region65: #{fourier_filter_block.1} parent=11 // pred_check
        %p487 = pneg %p344
      $region66: #{fourier_filter_block.1} parent=11 // pred_check_branch
        %489 = sbr.rel (%p487) target = $region68
      $region67: #{fourier_filter_block.1} parent=11 // pred_region
        _
      $region68: #{fourier_filter_block.1} parent=11 // pred_fallthru
        _
      // Predicated region
      $region69: #{fourier_filter_block.1} parent=11 // pred_check
        %p490 = pneg %p365
      $region70: #{fourier_filter_block.1} parent=11 // pred_check_branch
        %492 = sbr.rel (%p490) target = $region72
      $region71: #{fourier_filter_block.1} parent=11 // pred_region
        _
      $region72: #{fourier_filter_block.1} parent=11 // pred_fallthru
        _
      // Predicated region
      $region73: #{fourier_filter_block.1} parent=11 // pred_check
        %p493 = pneg %p386
      $region74: #{fourier_filter_block.1} parent=11 // pred_check_branch
        %495 = sbr.rel (%p493) target = $region76
      $region75: #{fourier_filter_block.1} parent=11 // pred_region
        _
      $region76: #{fourier_filter_block.1} parent=11 // pred_fallthru
        _
      // Predicated region
      $region77: #{fourier_filter_block.1} parent=11 // pred_check
        %p496 = pneg %p407
      $region78: #{fourier_filter_block.1} parent=11 // pred_check_branch
        %498 = sbr.rel (%p496) target = $region80
      $region79: #{fourier_filter_block.1} parent=11 // pred_region
        _
      $region80: #{fourier_filter_block.1} parent=11 // pred_fallthru
        _
    $region12: #{fourier_filter_block.1} parent=5 // pred_fallthru
      _
    %p499 = scmp.lt.s32.totalorder %s24, 2
    // Predicated region
    $region81: #{fourier_filter_block.1} parent=5 // pred_check
      %p500 = pneg %p499
    $region82: #{fourier_filter_block.1} parent=5 // pred_check_branch
      %502 = sbr.rel (%p500) target = $region84
    $region83: #{fourier_filter_block.1} parent=5 // pred_region
      // Predicated region
      $region85: #{fourier_filter_block.1} parent=83 // pred_check
        %p503 = pneg %p44
      $region86: #{fourier_filter_block.1} parent=83 // pred_check_branch
        %505 = sbr.rel (%p503) target = $region88
      $region87: #{fourier_filter_block.1} parent=83 // pred_region
        %p506 = scmp.lt.s32.totalorder %s24, 1
        %s507 = scalar_select %p506, %s24, 1
        %s508 = smul.addr %s507, 2
        %s509 = smul.addr %s508, 8
        %s510 = scalar_lea.vmem %s0, %s509
      $region88: #{fourier_filter_block.1} parent=83 // pred_fallthru
        _
    $region84: #{fourier_filter_block.1} parent=5 // pred_fallthru
      _
    %p511 = scmp.le.s32.totalorder 1, %s24
    %p512 = scmp.lt.s32.totalorder %s24, 3
    %p513 = pnand %p511, %p512
    %p514 = pneg %p513
    // Predicated region
    $region89: #{fourier_filter_block.1} parent=5 // pred_check
      _
    $region90: #{fourier_filter_block.1} parent=5 // pred_check_branch
      %516 = sbr.rel (%p513) target = $region92
    $region91: #{fourier_filter_block.1} parent=5 // pred_region
      %s517 = ssub.s32 %s24, 1
      %p518 = scmp.lt.s32.totalorder %s29, 1
      %s519 = scalar_select %p518, %s29, 1
      %s520 = smul.addr %s519, 2
      %s521 = smul.addr %s520, 8
      %s522 = scalar_lea.vmem %s0, %s521
      %p523 = pneg %p50
      %p524 = pneg %p47
      %p525 = pneg %p71
      %p526 = pneg %p68
      %p527 = pneg %p92
      %p528 = pneg %p89
      %p529 = pneg %p113
      %p530 = pneg %p110
      %p531 = pneg %p134
      %p532 = pneg %p131
      %p533 = pneg %p155
      %p534 = pneg %p152
      %p535 = pneg %p176
      %p536 = pneg %p173
      %p537 = pneg %p197
      %p538 = pneg %p194
      %p539 = pneg %p218
      %p540 = pneg %p215
      %p541 = pneg %p239
      %p542 = pneg %p236
      %p543 = pneg %p260
      %p544 = pneg %p257
      %p545 = pneg %p281
      %p546 = pneg %p278
      %p547 = pneg %p302
      %p548 = pneg %p299
      %p549 = pneg %p323
      %p550 = pneg %p320
      %p551 = pneg %p344
      %p552 = pneg %p341
      %p553 = pneg %p365
      %p554 = pneg %p362
      %p555 = pneg %p386
      %p556 = pneg %p383
      %p557 = pneg %p407
      %p558 = pneg %p404
      %p559 = pneg %p433
      %p560 = pneg %p430
      %p561 = scmp.lt.s32.totalorder %s29, 1
      %s562 = scalar_select %p561, %s29, 1
      %s563 = smul.addr %s562, 2
      %s564 = smul.addr %s563, 8
      %s565 = scalar_lea.vmem %s18, %s564
      %p566 = scmp.lt.s32.totalorder %s29, 1
      %s567 = scalar_select %p566, %s29, 1
      %s568 = smul.addr %s567, 2
      %s569 = smul.addr %s568, 8
      %s570 = scalar_lea.vmem %s0, %s569
      %p571 = scmp.lt.s32.totalorder %s29, 1
      %s572 = scalar_select %p571, %s29, 1
      %s573 = smul.addr %s572, 2
      %s574 = smul.addr %s573, 8
      %s575 = scalar_lea.vmem %s18, %s574
      %v577 = vld [vmem:[%s570] sm:$0xff]
      %v578 = vld [vmem:[%s570 + $0x8] sm:$0xff]
      %v579 = vld [vmem:[%s1] sm:$0xff]
      %v580 = vld [vmem:[%s1 + $0x8] sm:$0xff]
      %v581 = vld [vmem:[%s2] sm:$0xff]
      %v582 = vld [vmem:[%s2 + $0x8] sm:$0xff]
      %584 = vset.pattern.permute.xlu0 0
      %585 = vperm.xlu0 %584, %v581
      %v586 = vpop.permute.xlu0 %585
      %589 = vset.pattern.permute.xlu0 0
      %590 = vperm.xlu0 %589, %v582
      %v591 = vpop.permute.xlu0 %590
      %vm593 = vcmask 64512
      %v595 = vsel %vm593, %v579, 0
      %v598 = vsel %vm593, %v580, 0
      %600 = vmatpush.msra.mxu0 0.0
      %601 = vmatpush.msra.mxu0 0.0
      %602 = vmatpush.msra.mxu0 0.0
      %603 = vmatpush.msra.mxu0 0.0
      %604 = vmatpush.msra.mxu0 0.0
      %605 = vmatpush.msra.mxu0 0.0
      %606 = vmatpush.msra.mxu0 0.0
      %607 = vmatpush.msra.mxu0 0.0
      %608 = vmatpush.msra.mxu0 0.0
      %609 = vmatpush.msra.mxu0 0.0
      %610 = vmatpush.msra.mxu0 0.0
      %611 = vmatpush.msra.mxu0 0.0
      %612 = vmatpush.msra.mxu0 0.0
      %613 = vmatpush.msra.mxu0 0.0
      %614 = vmatpush.msra.mxu0 0.0
      %615 = vmatpush.msra.mxu0 %v577
      %616 = vmatmul.f32.gmra.mxu0 %v595
      %v617 = vpop.f32.mrf.mxu0
      %v618 = vadd.f32 %v586, %v617
      %619 = vmatmul.f32.gmra.mxu0 %v598
      %v620 = vpop.f32.mrf.mxu0
      %v621 = vadd.f32 %v591, %v620
      %622 = vdwg.mxu0
      %623 = vmatpush.msra.mxu0 0.0
      %624 = vmatpush.msra.mxu0 0.0
      %625 = vmatpush.msra.mxu0 0.0
      %626 = vmatpush.msra.mxu0 0.0
      %627 = vmatpush.msra.mxu0 0.0
      %628 = vmatpush.msra.mxu0 0.0
      %629 = vmatpush.msra.mxu0 0.0
      %630 = vmatpush.msra.mxu0 0.0
      %631 = vmatpush.msra.mxu0 0.0
      %632 = vmatpush.msra.mxu0 0.0
      %633 = vmatpush.msra.mxu0 0.0
      %634 = vmatpush.msra.mxu0 0.0
      %635 = vmatpush.msra.mxu0 0.0
      %636 = vmatpush.msra.mxu0 0.0
      %637 = vmatpush.msra.mxu0 0.0
      %638 = vmatpush.msra.mxu0 %v578
      %639 = vmatmul.f32.gmra.mxu0 %v595
      %v640 = vpop.f32.mrf.mxu0
      %v641 = vadd.f32 %v586, %v640
      %642 = vmatmul.f32.gmra.mxu0 %v598
      %v643 = vpop.f32.mrf.mxu0
      %v644 = vadd.f32 %v591, %v643
      %645 = vdwg.mxu0
      %v646 = vmul.f32 %v618, 0.5
      %v647 = vmul.f32 %v641, 0.5
      %v648 = vmul.f32 %v621, 0.5
      %v649 = vmul.f32 %v644, 0.5
      %v650 = vmul.f32 %v618, 0.044715
      %v651 = vmul.f32 %v641, 0.044715
      %v652 = vmul.f32 %v621, 0.044715
      %v653 = vmul.f32 %v644, 0.044715
      %v654 = vmul.f32 %v650, %v618
      %v655 = vmul.f32 %v651, %v641
      %v656 = vmul.f32 %v652, %v621
      %v657 = vmul.f32 %v653, %v644
      %v658 = vmul.f32 %v654, %v618
      %v659 = vmul.f32 %v655, %v641
      %v660 = vmul.f32 %v656, %v621
      %v661 = vmul.f32 %v657, %v644
      %v662 = vadd.f32 %v618, %v658
      %v663 = vadd.f32 %v641, %v659
      %v664 = vadd.f32 %v621, %v660
      %v665 = vadd.f32 %v644, %v661
      %v666 = vmul.f32 %v662, 0.7978846
      %v667 = vmul.f32 %v663, 0.7978846
      %v668 = vmul.f32 %v664, 0.7978846
      %v669 = vmul.f32 %v665, 0.7978846
      %v670 = vtanh.pop %v666
      %v671 = vtanh.pop %v667
      %v672 = vtanh.pop %v668
      %v673 = vtanh.pop %v669
      %v674 = vadd.f32 %v670, 1.0
      %v675 = vadd.f32 %v671, 1.0
      %v676 = vadd.f32 %v672, 1.0
      %v677 = vadd.f32 %v673, 1.0
      %v678 = vmul.f32 %v646, %v674
      %v679 = vmul.f32 %v647, %v675
      %v680 = vmul.f32 %v648, %v676
      %v681 = vmul.f32 %v649, %v677
      %v682 = vpack.c.bf16 %v680, %v678
      %v683 = vpack.c.bf16 %v681, %v679
      %v684 = vld [vmem:[%s3] sm:$0xff]
      %v685 = vld [vmem:[%s3 + $0x8] sm:$0xff]
      %v686 = vld [vmem:[%s3 + $0x10] sm:$0xff]
      %v687 = vld [vmem:[%s3 + $0x18] sm:$0xff]
      %v688 = vld [vmem:[%s3 + $0x20] sm:$0xff]
      %v689 = vld [vmem:[%s3 + $0x28] sm:$0xff]
      %v690 = vld [vmem:[%s3 + $0x30] sm:$0xff]
      %v691 = vld [vmem:[%s3 + $0x38] sm:$0xff]
      %v692 = vld [vmem:[%s3 + $0x40] sm:$0xff]
      %v693 = vld [vmem:[%s3 + $0x48] sm:$0xff]
      %v694 = vld [vmem:[%s3 + $0x50] sm:$0xff]
      %v695 = vld [vmem:[%s3 + $0x58] sm:$0xff]
      %v696 = vld [vmem:[%s3 + $0x60] sm:$0xff]
      %v697 = vld [vmem:[%s3 + $0x68] sm:$0xff]
      %v698 = vld [vmem:[%s3 + $0x70] sm:$0xff]
      %v699 = vld [vmem:[%s3 + $0x78] sm:$0xff]
      %v700 = vld [vmem:[%s3 + $0x80] sm:$0xff]
      %v701 = vld [vmem:[%s3 + $0x88] sm:$0xff]
      %v702 = vld [vmem:[%s3 + $0x90] sm:$0xff]
      %v703 = vld [vmem:[%s3 + $0x98] sm:$0xff]
      %v704 = vld [vmem:[%s3 + $0xa0] sm:$0xff]
      %v705 = vld [vmem:[%s3 + $0xa8] sm:$0xff]
      %v706 = vld [vmem:[%s3 + $0xb0] sm:$0xff]
      %v707 = vld [vmem:[%s3 + $0xb8] sm:$0xff]
      %v708 = vld [vmem:[%s3 + $0xc0] sm:$0xff]
      %v709 = vld [vmem:[%s3 + $0xc8] sm:$0xff]
      %v710 = vld [vmem:[%s3 + $0xd0] sm:$0xff]
      %v711 = vld [vmem:[%s3 + $0xd8] sm:$0xff]
      %v712 = vld [vmem:[%s3 + $0xe0] sm:$0xff]
      %v713 = vld [vmem:[%s3 + $0xe8] sm:$0xff]
      %v714 = vld [vmem:[%s3 + $0xf0] sm:$0xff]
      %v715 = vld [vmem:[%s3 + $0xf8] sm:$0xff]
      %v748 = vunpack.c.l.b16 %v684
      %v749 = vunpack.c.h.b16 %v684
      %v750 = vunpack.c.l.b16 %v685
      %v751 = vunpack.c.h.b16 %v685
      %v752 = vunpack.c.l.b16 %v686
      %v753 = vunpack.c.h.b16 %v686
      %v754 = vunpack.c.l.b16 %v687
      %v755 = vunpack.c.h.b16 %v687
      %v756 = vunpack.c.l.b16 %v688
      %v757 = vunpack.c.h.b16 %v688
      %v758 = vunpack.c.l.b16 %v689
      %v759 = vunpack.c.h.b16 %v689
      %v760 = vunpack.c.l.b16 %v690
      %v761 = vunpack.c.h.b16 %v690
      %v762 = vunpack.c.l.b16 %v691
      %v763 = vunpack.c.h.b16 %v691
      %v764 = vunpack.c.l.b16 %v692
      %v765 = vunpack.c.h.b16 %v692
      %v766 = vunpack.c.l.b16 %v693
      %v767 = vunpack.c.h.b16 %v693
      %v768 = vunpack.c.l.b16 %v694
      %v769 = vunpack.c.h.b16 %v694
      %v770 = vunpack.c.l.b16 %v695
      %v771 = vunpack.c.h.b16 %v695
      %v772 = vunpack.c.l.b16 %v696
      %v773 = vunpack.c.h.b16 %v696
      %v774 = vunpack.c.l.b16 %v697
      %v775 = vunpack.c.h.b16 %v697
      %v776 = vunpack.c.l.b16 %v698
      %v777 = vunpack.c.h.b16 %v698
      %v778 = vunpack.c.l.b16 %v699
      %v779 = vunpack.c.h.b16 %v699
      %v780 = vunpack.c.l.b16 %v700
      %v781 = vunpack.c.h.b16 %v700
      %v782 = vunpack.c.l.b16 %v701
      %v783 = vunpack.c.h.b16 %v701
      %v784 = vunpack.c.l.b16 %v702
      %v785 = vunpack.c.h.b16 %v702
      %v786 = vunpack.c.l.b16 %v703
      %v787 = vunpack.c.h.b16 %v703
      %v788 = vunpack.c.l.b16 %v704
      %v789 = vunpack.c.h.b16 %v704
      %v790 = vunpack.c.l.b16 %v705
      %v791 = vunpack.c.h.b16 %v705
      %v792 = vunpack.c.l.b16 %v706
      %v793 = vunpack.c.h.b16 %v706
      %v794 = vunpack.c.l.b16 %v707
      %v795 = vunpack.c.h.b16 %v707
      %v796 = vunpack.c.l.b16 %v708
      %v797 = vunpack.c.h.b16 %v708
      %v798 = vunpack.c.l.b16 %v709
      %v799 = vunpack.c.h.b16 %v709
      %v800 = vunpack.c.l.b16 %v710
      %v801 = vunpack.c.h.b16 %v710
      %v802 = vunpack.c.l.b16 %v711
      %v803 = vunpack.c.h.b16 %v711
      %v804 = vunpack.c.l.b16 %v712
      %v805 = vunpack.c.h.b16 %v712
      %v806 = vunpack.c.l.b16 %v713
      %v807 = vunpack.c.h.b16 %v713
      %v808 = vunpack.c.l.b16 %v714
      %v809 = vunpack.c.h.b16 %v714
      %v810 = vunpack.c.l.b16 %v715
      %v811 = vunpack.c.h.b16 %v715
      %v812 = vpack.c.b16 %v750, %v748
      %v813 = vpack.c.b16 %v751, %v749
      %v814 = vpack.c.b16 %v754, %v752
      %v815 = vpack.c.b16 %v755, %v753
      %v816 = vpack.c.b16 %v758, %v756
      %v817 = vpack.c.b16 %v759, %v757
      %v818 = vpack.c.b16 %v762, %v760
      %v819 = vpack.c.b16 %v763, %v761
      %v820 = vpack.c.b16 %v766, %v764
      %v821 = vpack.c.b16 %v767, %v765
      %v822 = vpack.c.b16 %v770, %v768
      %v823 = vpack.c.b16 %v771, %v769
      %v824 = vpack.c.b16 %v774, %v772
      %v825 = vpack.c.b16 %v775, %v773
      %v826 = vpack.c.b16 %v778, %v776
      %v827 = vpack.c.b16 %v779, %v777
      %v828 = vpack.c.b16 %v782, %v780
      %v829 = vpack.c.b16 %v783, %v781
      %v830 = vpack.c.b16 %v786, %v784
      %v831 = vpack.c.b16 %v787, %v785
      %v832 = vpack.c.b16 %v790, %v788
      %v833 = vpack.c.b16 %v791, %v789
      %v834 = vpack.c.b16 %v794, %v792
      %v835 = vpack.c.b16 %v795, %v793
      %v836 = vpack.c.b16 %v798, %v796
      %v837 = vpack.c.b16 %v799, %v797
      %v838 = vpack.c.b16 %v802, %v800
      %v839 = vpack.c.b16 %v803, %v801
      %v840 = vpack.c.b16 %v806, %v804
      %v841 = vpack.c.b16 %v807, %v805
      %v842 = vpack.c.b16 %v810, %v808
      %v843 = vpack.c.b16 %v811, %v809
      %876 = vmatpush.bf16.msra.mxu0 %v826
      %877 = vmatpush.bf16.msra.mxu0 %v824
      %878 = vmatpush.bf16.msra.mxu0 %v822
      %879 = vmatpush.bf16.msra.mxu0 %v820
      %880 = vmatpush.bf16.msra.mxu0 %v818
      %881 = vmatpush.bf16.msra.mxu0 %v816
      %882 = vmatpush.bf16.msra.mxu0 %v814
      %883 = vmatpush.bf16.msra.mxu0 %v812
      %884 = vmatmul.bf16.gmra.mxu0 %v682
      %v885 = vpop.f32.mrf.mxu0
      %v886 = vadd.f32 0.0, %v885
      %v887 = vpop.f32.mrf.mxu0
      %v888 = vadd.f32 0.0, %v887
      %889 = vdwg.mxu0
      %890 = vmatpush.bf16.msra.mxu0 %v842
      %891 = vmatpush.bf16.msra.mxu0 %v840
      %892 = vmatpush.bf16.msra.mxu0 %v838
      %893 = vmatpush.bf16.msra.mxu0 %v836
      %894 = vmatpush.bf16.msra.mxu0 %v834
      %895 = vmatpush.bf16.msra.mxu0 %v832
      %896 = vmatpush.bf16.msra.mxu0 %v830
      %897 = vmatpush.bf16.msra.mxu0 %v828
      %898 = vmatmul.bf16.gmra.mxu0 %v683
      %v899 = vpop.f32.mrf.mxu0
      %v900 = vadd.f32 %v886, %v899
      %v901 = vpop.f32.mrf.mxu0
      %v902 = vadd.f32 %v888, %v901
      %903 = vdwg.mxu0
      %904 = vmatpush.bf16.msra.mxu0 %v827
      %905 = vmatpush.bf16.msra.mxu0 %v825
      %906 = vmatpush.bf16.msra.mxu0 %v823
      %907 = vmatpush.bf16.msra.mxu0 %v821
      %908 = vmatpush.bf16.msra.mxu0 %v819
      %909 = vmatpush.bf16.msra.mxu0 %v817
      %910 = vmatpush.bf16.msra.mxu0 %v815
      %911 = vmatpush.bf16.msra.mxu0 %v813
      %912 = vmatmul.bf16.gmra.mxu0 %v682
      %v913 = vpop.f32.mrf.mxu0
      %v914 = vadd.f32 0.0, %v913
      %v915 = vpop.f32.mrf.mxu0
      %v916 = vadd.f32 0.0, %v915
      %917 = vdwg.mxu0
      %918 = vmatpush.bf16.msra.mxu0 %v843
      %919 = vmatpush.bf16.msra.mxu0 %v841
      %920 = vmatpush.bf16.msra.mxu0 %v839
      %921 = vmatpush.bf16.msra.mxu0 %v837
      %922 = vmatpush.bf16.msra.mxu0 %v835
      %923 = vmatpush.bf16.msra.mxu0 %v833
      %924 = vmatpush.bf16.msra.mxu0 %v831
      %925 = vmatpush.bf16.msra.mxu0 %v829
      %926 = vmatmul.bf16.gmra.mxu0 %v683
      %v927 = vpop.f32.mrf.mxu0
      %v928 = vadd.f32 %v914, %v927
      %v929 = vpop.f32.mrf.mxu0
      %v930 = vadd.f32 %v916, %v929
      %931 = vdwg.mxu0
      %v932 = vld [vmem:[%s4] sm:$0xff]
      %v933 = vld [vmem:[%s4 + $0x8] sm:$0xff]
      %v934 = vld [vmem:[%s4 + $0x10] sm:$0xff]
      %v935 = vld [vmem:[%s4 + $0x18] sm:$0xff]
      %v936 = vld [vmem:[%s4 + $0x20] sm:$0xff]
      %v937 = vld [vmem:[%s4 + $0x28] sm:$0xff]
      %v938 = vld [vmem:[%s4 + $0x30] sm:$0xff]
      %v939 = vld [vmem:[%s4 + $0x38] sm:$0xff]
      %v940 = vld [vmem:[%s4 + $0x40] sm:$0xff]
      %v941 = vld [vmem:[%s4 + $0x48] sm:$0xff]
      %v942 = vld [vmem:[%s4 + $0x50] sm:$0xff]
      %v943 = vld [vmem:[%s4 + $0x58] sm:$0xff]
      %v944 = vld [vmem:[%s4 + $0x60] sm:$0xff]
      %v945 = vld [vmem:[%s4 + $0x68] sm:$0xff]
      %v946 = vld [vmem:[%s4 + $0x70] sm:$0xff]
      %v947 = vld [vmem:[%s4 + $0x78] sm:$0xff]
      %v948 = vld [vmem:[%s4 + $0x80] sm:$0xff]
      %v949 = vld [vmem:[%s4 + $0x88] sm:$0xff]
      %v950 = vld [vmem:[%s4 + $0x90] sm:$0xff]
      %v951 = vld [vmem:[%s4 + $0x98] sm:$0xff]
      %v952 = vld [vmem:[%s4 + $0xa0] sm:$0xff]
      %v953 = vld [vmem:[%s4 + $0xa8] sm:$0xff]
      %v954 = vld [vmem:[%s4 + $0xb0] sm:$0xff]
      %v955 = vld [vmem:[%s4 + $0xb8] sm:$0xff]
      %v956 = vld [vmem:[%s4 + $0xc0] sm:$0xff]
      %v957 = vld [vmem:[%s4 + $0xc8] sm:$0xff]
      %v958 = vld [vmem:[%s4 + $0xd0] sm:$0xff]
      %v959 = vld [vmem:[%s4 + $0xd8] sm:$0xff]
      %v960 = vld [vmem:[%s4 + $0xe0] sm:$0xff]
      %v961 = vld [vmem:[%s4 + $0xe8] sm:$0xff]
      %v962 = vld [vmem:[%s4 + $0xf0] sm:$0xff]
      %v963 = vld [vmem:[%s4 + $0xf8] sm:$0xff]
      %v996 = vunpack.c.l.b16 %v932
      %v997 = vunpack.c.h.b16 %v932
      %v998 = vunpack.c.l.b16 %v933
      %v999 = vunpack.c.h.b16 %v933
      %v1000 = vunpack.c.l.b16 %v934
      %v1001 = vunpack.c.h.b16 %v934
      %v1002 = vunpack.c.l.b16 %v935
      %v1003 = vunpack.c.h.b16 %v935
      %v1004 = vunpack.c.l.b16 %v936
      %v1005 = vunpack.c.h.b16 %v936
      %v1006 = vunpack.c.l.b16 %v937
      %v1007 = vunpack.c.h.b16 %v937
      %v1008 = vunpack.c.l.b16 %v938
      %v1009 = vunpack.c.h.b16 %v938
      %v1010 = vunpack.c.l.b16 %v939
      %v1011 = vunpack.c.h.b16 %v939
      %v1012 = vunpack.c.l.b16 %v940
      %v1013 = vunpack.c.h.b16 %v940
      %v1014 = vunpack.c.l.b16 %v941
      %v1015 = vunpack.c.h.b16 %v941
      %v1016 = vunpack.c.l.b16 %v942
      %v1017 = vunpack.c.h.b16 %v942
      %v1018 = vunpack.c.l.b16 %v943
      %v1019 = vunpack.c.h.b16 %v943
      %v1020 = vunpack.c.l.b16 %v944
      %v1021 = vunpack.c.h.b16 %v944
      %v1022 = vunpack.c.l.b16 %v945
      %v1023 = vunpack.c.h.b16 %v945
      %v1024 = vunpack.c.l.b16 %v946
      %v1025 = vunpack.c.h.b16 %v946
      %v1026 = vunpack.c.l.b16 %v947
      %v1027 = vunpack.c.h.b16 %v947
      %v1028 = vunpack.c.l.b16 %v948
      %v1029 = vunpack.c.h.b16 %v948
      %v1030 = vunpack.c.l.b16 %v949
      %v1031 = vunpack.c.h.b16 %v949
      %v1032 = vunpack.c.l.b16 %v950
      %v1033 = vunpack.c.h.b16 %v950
      %v1034 = vunpack.c.l.b16 %v951
      %v1035 = vunpack.c.h.b16 %v951
      %v1036 = vunpack.c.l.b16 %v952
      %v1037 = vunpack.c.h.b16 %v952
      %v1038 = vunpack.c.l.b16 %v953
      %v1039 = vunpack.c.h.b16 %v953
      %v1040 = vunpack.c.l.b16 %v954
      %v1041 = vunpack.c.h.b16 %v954
      %v1042 = vunpack.c.l.b16 %v955
      %v1043 = vunpack.c.h.b16 %v955
      %v1044 = vunpack.c.l.b16 %v956
      %v1045 = vunpack.c.h.b16 %v956
      %v1046 = vunpack.c.l.b16 %v957
      %v1047 = vunpack.c.h.b16 %v957
      %v1048 = vunpack.c.l.b16 %v958
      %v1049 = vunpack.c.h.b16 %v958
      %v1050 = vunpack.c.l.b16 %v959
      %v1051 = vunpack.c.h.b16 %v959
      %v1052 = vunpack.c.l.b16 %v960
      %v1053 = vunpack.c.h.b16 %v960
      %v1054 = vunpack.c.l.b16 %v961
      %v1055 = vunpack.c.h.b16 %v961
      %v1056 = vunpack.c.l.b16 %v962
      %v1057 = vunpack.c.h.b16 %v962
      %v1058 = vunpack.c.l.b16 %v963
      %v1059 = vunpack.c.h.b16 %v963
      %v1060 = vpack.c.b16 %v998, %v996
      %v1061 = vpack.c.b16 %v999, %v997
      %v1062 = vpack.c.b16 %v1002, %v1000
      %v1063 = vpack.c.b16 %v1003, %v1001
      %v1064 = vpack.c.b16 %v1006, %v1004
      %v1065 = vpack.c.b16 %v1007, %v1005
      %v1066 = vpack.c.b16 %v1010, %v1008
      %v1067 = vpack.c.b16 %v1011, %v1009
      %v1068 = vpack.c.b16 %v1014, %v1012
      %v1069 = vpack.c.b16 %v1015, %v1013
      %v1070 = vpack.c.b16 %v1018, %v1016
      %v1071 = vpack.c.b16 %v1019, %v1017
      %v1072 = vpack.c.b16 %v1022, %v1020
      %v1073 = vpack.c.b16 %v1023, %v1021
      %v1074 = vpack.c.b16 %v1026, %v1024
      %v1075 = vpack.c.b16 %v1027, %v1025
      %v1076 = vpack.c.b16 %v1030, %v1028
      %v1077 = vpack.c.b16 %v1031, %v1029
      %v1078 = vpack.c.b16 %v1034, %v1032
      %v1079 = vpack.c.b16 %v1035, %v1033
      %v1080 = vpack.c.b16 %v1038, %v1036
      %v1081 = vpack.c.b16 %v1039, %v1037
      %v1082 = vpack.c.b16 %v1042, %v1040
      %v1083 = vpack.c.b16 %v1043, %v1041
      %v1084 = vpack.c.b16 %v1046, %v1044
      %v1085 = vpack.c.b16 %v1047, %v1045
      %v1086 = vpack.c.b16 %v1050, %v1048
      %v1087 = vpack.c.b16 %v1051, %v1049
      %v1088 = vpack.c.b16 %v1054, %v1052
      %v1089 = vpack.c.b16 %v1055, %v1053
      %v1090 = vpack.c.b16 %v1058, %v1056
      %v1091 = vpack.c.b16 %v1059, %v1057
      %1124 = vmatpush.bf16.msra.mxu0 %v1074
      %1125 = vmatpush.bf16.msra.mxu0 %v1072
      %1126 = vmatpush.bf16.msra.mxu0 %v1070
      %1127 = vmatpush.bf16.msra.mxu0 %v1068
      %1128 = vmatpush.bf16.msra.mxu0 %v1066
      %1129 = vmatpush.bf16.msra.mxu0 %v1064
      %1130 = vmatpush.bf16.msra.mxu0 %v1062
      %1131 = vmatpush.bf16.msra.mxu0 %v1060
      %1132 = vmatmul.bf16.gmra.mxu0 %v682
      %v1133 = vpop.f32.mrf.mxu0
      %v1134 = vadd.f32 0.0, %v1133
      %v1135 = vpop.f32.mrf.mxu0
      %v1136 = vadd.f32 0.0, %v1135
      %1137 = vdwg.mxu0
      %1138 = vmatpush.bf16.msra.mxu0 %v1090
      %1139 = vmatpush.bf16.msra.mxu0 %v1088
      %1140 = vmatpush.bf16.msra.mxu0 %v1086
      %1141 = vmatpush.bf16.msra.mxu0 %v1084
      %1142 = vmatpush.bf16.msra.mxu0 %v1082
      %1143 = vmatpush.bf16.msra.mxu0 %v1080
      %1144 = vmatpush.bf16.msra.mxu0 %v1078
      %1145 = vmatpush.bf16.msra.mxu0 %v1076
      %1146 = vmatmul.bf16.gmra.mxu0 %v683
      %v1147 = vpop.f32.mrf.mxu0
      %v1148 = vadd.f32 %v1134, %v1147
      %v1149 = vpop.f32.mrf.mxu0
      %v1150 = vadd.f32 %v1136, %v1149
      %1151 = vdwg.mxu0
      %1152 = vmatpush.bf16.msra.mxu0 %v1075
      %1153 = vmatpush.bf16.msra.mxu0 %v1073
      %1154 = vmatpush.bf16.msra.mxu0 %v1071
      %1155 = vmatpush.bf16.msra.mxu0 %v1069
      %1156 = vmatpush.bf16.msra.mxu0 %v1067
      %1157 = vmatpush.bf16.msra.mxu0 %v1065
      %1158 = vmatpush.bf16.msra.mxu0 %v1063
      %1159 = vmatpush.bf16.msra.mxu0 %v1061
      %1160 = vmatmul.bf16.gmra.mxu0 %v682
      %v1161 = vpop.f32.mrf.mxu0
      %v1162 = vadd.f32 0.0, %v1161
      %v1163 = vpop.f32.mrf.mxu0
      %v1164 = vadd.f32 0.0, %v1163
      %1165 = vdwg.mxu0
      %1166 = vmatpush.bf16.msra.mxu0 %v1091
      %1167 = vmatpush.bf16.msra.mxu0 %v1089
      %1168 = vmatpush.bf16.msra.mxu0 %v1087
      %1169 = vmatpush.bf16.msra.mxu0 %v1085
      %1170 = vmatpush.bf16.msra.mxu0 %v1083
      %1171 = vmatpush.bf16.msra.mxu0 %v1081
      %1172 = vmatpush.bf16.msra.mxu0 %v1079
      %1173 = vmatpush.bf16.msra.mxu0 %v1077
      %1174 = vmatmul.bf16.gmra.mxu0 %v683
      %v1175 = vpop.f32.mrf.mxu0
      %v1176 = vadd.f32 %v1162, %v1175
      %v1177 = vpop.f32.mrf.mxu0
      %v1178 = vadd.f32 %v1164, %v1177
      %1179 = vdwg.mxu0
      %v1180 = vld [vmem:[%s7] sm:$0xff]
      %v1181 = vld [vmem:[%s7 + $0x8] sm:$0xff]
      %v1182 = vld [vmem:[%s7 + $0x10] sm:$0xff]
      %v1183 = vld [vmem:[%s7 + $0x18] sm:$0xff]
      %v1184 = vld [vmem:[%s8] sm:$0xff]
      %v1185 = vld [vmem:[%s8 + $0x8] sm:$0xff]
      %v1186 = vld [vmem:[%s8 + $0x10] sm:$0xff]
      %v1187 = vld [vmem:[%s8 + $0x18] sm:$0xff]
      %v1188 = vmul.f32 %v900, %v1180
      %v1189 = vmul.f32 %v928, %v1181
      %v1190 = vmul.f32 %v902, %v1182
      %v1191 = vmul.f32 %v930, %v1183
      %v1192 = vmul.f32 %v1148, %v1184
      %v1193 = vmul.f32 %v1176, %v1185
      %v1194 = vmul.f32 %v1150, %v1186
      %v1195 = vmul.f32 %v1178, %v1187
      %v1196 = vsub.f32 %v1188, %v1192
      %v1197 = vsub.f32 %v1189, %v1193
      %v1198 = vsub.f32 %v1190, %v1194
      %v1199 = vsub.f32 %v1191, %v1195
      %v1200 = vmul.f32 %v900, %v1184
      %v1201 = vmul.f32 %v928, %v1185
      %v1202 = vmul.f32 %v902, %v1186
      %v1203 = vmul.f32 %v930, %v1187
      %v1204 = vmul.f32 %v1148, %v1180
      %v1205 = vmul.f32 %v1176, %v1181
      %v1206 = vmul.f32 %v1150, %v1182
      %v1207 = vmul.f32 %v1178, %v1183
      %v1208 = vadd.f32 %v1200, %v1204
      %v1209 = vadd.f32 %v1201, %v1205
      %v1210 = vadd.f32 %v1202, %v1206
      %v1211 = vadd.f32 %v1203, %v1207
      %v1212 = vld [vmem:[%s9] sm:$0xff]
      %v1213 = vld [vmem:[%s9 + $0x8] sm:$0xff]
      %v1214 = vld [vmem:[%s10] sm:$0xff]
      %v1215 = vld [vmem:[%s10 + $0x8] sm:$0xff]
      %vm1216 = vcmask 130048
      %v1218 = vsel %vm1216, %v1214, 0
      %v1221 = vsel %vm1216, %v1215, 0
      %1223 = vmatpush.msra.mxu0 0.0
      %1224 = vmatpush.msra.mxu0 0.0
      %1225 = vmatpush.msra.mxu0 0.0
      %1226 = vmatpush.msra.mxu0 0.0
      %1227 = vmatpush.msra.mxu0 0.0
      %1228 = vmatpush.msra.mxu0 0.0
      %1229 = vmatpush.msra.mxu0 0.0
      %1230 = vmatpush.msra.mxu0 0.0
      %1231 = vmatpush.msra.mxu0 0.0
      %1232 = vmatpush.msra.mxu0 0.0
      %1233 = vmatpush.msra.mxu0 0.0
      %1234 = vmatpush.msra.mxu0 0.0
      %1235 = vmatpush.msra.mxu0 0.0
      %1236 = vmatpush.msra.mxu0 0.0
      %1237 = vmatpush.msra.mxu0 %v1150
      %1238 = vmatpush.msra.mxu0 %v1148
      %1239 = vmatmul.f32.gmra.mxu0 %v1218
      %v1240 = vpop.f32.mrf.mxu0
      %v1241 = vadd.f32 0.0, %v1240
      %1242 = vmatmul.f32.gmra.mxu0 %v1221
      %v1243 = vpop.f32.mrf.mxu0
      %v1244 = vadd.f32 0.0, %v1243
      %1245 = vdwg.mxu0
      %1246 = vmatpush.msra.mxu0 0.0
      %1247 = vmatpush.msra.mxu0 0.0
      %1248 = vmatpush.msra.mxu0 0.0
      %1249 = vmatpush.msra.mxu0 0.0
      %1250 = vmatpush.msra.mxu0 0.0
      %1251 = vmatpush.msra.mxu0 0.0
      %1252 = vmatpush.msra.mxu0 0.0
      %1253 = vmatpush.msra.mxu0 0.0
      %1254 = vmatpush.msra.mxu0 0.0
      %1255 = vmatpush.msra.mxu0 0.0
      %1256 = vmatpush.msra.mxu0 0.0
      %1257 = vmatpush.msra.mxu0 0.0
      %1258 = vmatpush.msra.mxu0 0.0
      %1259 = vmatpush.msra.mxu0 0.0
      %1260 = vmatpush.msra.mxu0 %v1178
      %1261 = vmatpush.msra.mxu0 %v1176
      %1262 = vmatmul.f32.gmra.mxu0 %v1218
      %v1263 = vpop.f32.mrf.mxu0
      %v1264 = vadd.f32 0.0, %v1263
      %1265 = vmatmul.f32.gmra.mxu0 %v1221
      %v1266 = vpop.f32.mrf.mxu0
      %v1267 = vadd.f32 0.0, %v1266
      %1268 = vdwg.mxu0
      %v1270 = vsel %vm1216, %v1212, 0
      %v1273 = vsel %vm1216, %v1213, 0
      %1275 = vmatpush.msra.mxu0 0.0
      %1276 = vmatpush.msra.mxu0 0.0
      %1277 = vmatpush.msra.mxu0 0.0
      %1278 = vmatpush.msra.mxu0 0.0
      %1279 = vmatpush.msra.mxu0 0.0
      %1280 = vmatpush.msra.mxu0 0.0
      %1281 = vmatpush.msra.mxu0 0.0
      %1282 = vmatpush.msra.mxu0 0.0
      %1283 = vmatpush.msra.mxu0 0.0
      %1284 = vmatpush.msra.mxu0 0.0
      %1285 = vmatpush.msra.mxu0 0.0
      %1286 = vmatpush.msra.mxu0 0.0
      %1287 = vmatpush.msra.mxu0 0.0
      %1288 = vmatpush.msra.mxu0 0.0
      %1289 = vmatpush.msra.mxu0 %v902
      %1290 = vmatpush.msra.mxu0 %v900
      %1291 = vmatmul.f32.gmra.mxu0 %v1270
      %v1292 = vpop.f32.mrf.mxu0
      %v1293 = vadd.f32 %v1241, %v1292
      %1294 = vmatmul.f32.gmra.mxu0 %v1273
      %v1295 = vpop.f32.mrf.mxu0
      %v1296 = vadd.f32 %v1244, %v1295
      %1297 = vdwg.mxu0
      %1298 = vmatpush.msra.mxu0 0.0
      %1299 = vmatpush.msra.mxu0 0.0
      %1300 = vmatpush.msra.mxu0 0.0
      %1301 = vmatpush.msra.mxu0 0.0
      %1302 = vmatpush.msra.mxu0 0.0
      %1303 = vmatpush.msra.mxu0 0.0
      %1304 = vmatpush.msra.mxu0 0.0
      %1305 = vmatpush.msra.mxu0 0.0
      %1306 = vmatpush.msra.mxu0 0.0
      %1307 = vmatpush.msra.mxu0 0.0
      %1308 = vmatpush.msra.mxu0 0.0
      %1309 = vmatpush.msra.mxu0 0.0
      %1310 = vmatpush.msra.mxu0 0.0
      %1311 = vmatpush.msra.mxu0 0.0
      %1312 = vmatpush.msra.mxu0 %v930
      %1313 = vmatpush.msra.mxu0 %v928
      %1314 = vmatmul.f32.gmra.mxu0 %v1270
      %v1315 = vpop.f32.mrf.mxu0
      %v1316 = vadd.f32 %v1264, %v1315
      %1317 = vmatmul.f32.gmra.mxu0 %v1273
      %v1318 = vpop.f32.mrf.mxu0
      %v1319 = vadd.f32 %v1267, %v1318
      %1320 = vdwg.mxu0
      %v1321 = vld [vmem:[%s11] sm:$0xff]
      %v1322 = vld [vmem:[%s11 + $0x8] sm:$0xff]
      %1324 = vset.pattern.permute.xlu0 0
      %1325 = vperm.xlu0 %1324, %v1321
      %v1326 = vpop.permute.xlu0 %1325
      %1329 = vset.pattern.permute.xlu0 0
      %1330 = vperm.xlu0 %1329, %v1322
      %v1331 = vpop.permute.xlu0 %1330
      %v1333 = vadd.f32 %v1293, %v1326
      %v1334 = vadd.f32 %v1316, %v1326
      %v1335 = vadd.f32 %v1296, %v1331
      %v1336 = vadd.f32 %v1319, %v1331
      %v1337 = vmul.f32 %v1333, 0.5
      %v1338 = vmul.f32 %v1334, 0.5
      %v1339 = vmul.f32 %v1335, 0.5
      %v1340 = vmul.f32 %v1336, 0.5
      %v1341 = vmul.f32 %v1333, 0.044715
      %v1342 = vmul.f32 %v1334, 0.044715
      %v1343 = vmul.f32 %v1335, 0.044715
      %v1344 = vmul.f32 %v1336, 0.044715
      %v1345 = vmul.f32 %v1341, %v1333
      %v1346 = vmul.f32 %v1342, %v1334
      %v1347 = vmul.f32 %v1343, %v1335
      %v1348 = vmul.f32 %v1344, %v1336
      %v1349 = vmul.f32 %v1345, %v1333
      %v1350 = vmul.f32 %v1346, %v1334
      %v1351 = vmul.f32 %v1347, %v1335
      %v1352 = vmul.f32 %v1348, %v1336
      %v1353 = vadd.f32 %v1333, %v1349
      %v1354 = vadd.f32 %v1334, %v1350
      %v1355 = vadd.f32 %v1335, %v1351
      %v1356 = vadd.f32 %v1336, %v1352
      %v1357 = vmul.f32 %v1353, 0.7978846
      %v1358 = vmul.f32 %v1354, 0.7978846
      %v1359 = vmul.f32 %v1355, 0.7978846
      %v1360 = vmul.f32 %v1356, 0.7978846
      %v1361 = vtanh.pop %v1357
      %v1362 = vtanh.pop %v1358
      %v1363 = vtanh.pop %v1359
      %v1364 = vtanh.pop %v1360
      %v1365 = vadd.f32 %v1361, 1.0
      %v1366 = vadd.f32 %v1362, 1.0
      %v1367 = vadd.f32 %v1363, 1.0
      %v1368 = vadd.f32 %v1364, 1.0
      %v1369 = vmul.f32 %v1337, %v1365
      %v1370 = vmul.f32 %v1338, %v1366
      %v1371 = vmul.f32 %v1339, %v1367
      %v1372 = vmul.f32 %v1340, %v1368
      %v1373 = vld [vmem:[%s12] sm:$0xff]
      %v1374 = vld [vmem:[%s12 + $0x8] sm:$0xff]
      %v1375 = vld [vmem:[%s13] sm:$0xff]
      %v1376 = vld [vmem:[%s13 + $0x8] sm:$0xff]
      %1378 = vset.pattern.permute.xlu0 0
      %1379 = vperm.xlu0 %1378, %v1375
      %v1380 = vpop.permute.xlu0 %1379
      %1383 = vset.pattern.permute.xlu0 0
      %1384 = vperm.xlu0 %1383, %v1376
      %v1385 = vpop.permute.xlu0 %1384
      %v1388 = vsel %vm1216, %v1373, 0
      %v1391 = vsel %vm1216, %v1374, 0
      %1393 = vmatpush.msra.mxu0 0.0
      %1394 = vmatpush.msra.mxu0 0.0
      %1395 = vmatpush.msra.mxu0 0.0
      %1396 = vmatpush.msra.mxu0 0.0
      %1397 = vmatpush.msra.mxu0 0.0
      %1398 = vmatpush.msra.mxu0 0.0
      %1399 = vmatpush.msra.mxu0 0.0
      %1400 = vmatpush.msra.mxu0 0.0
      %1401 = vmatpush.msra.mxu0 0.0
      %1402 = vmatpush.msra.mxu0 0.0
      %1403 = vmatpush.msra.mxu0 0.0
      %1404 = vmatpush.msra.mxu0 0.0
      %1405 = vmatpush.msra.mxu0 0.0
      %1406 = vmatpush.msra.mxu0 0.0
      %1407 = vmatpush.msra.mxu0 %v1371
      %1408 = vmatpush.msra.mxu0 %v1369
      %1409 = vmatmul.f32.gmra.mxu0 %v1388
      %v1410 = vpop.f32.mrf.mxu0
      %v1411 = vadd.f32 %v1380, %v1410
      %1412 = vmatmul.f32.gmra.mxu0 %v1391
      %v1413 = vpop.f32.mrf.mxu0
      %v1414 = vadd.f32 %v1385, %v1413
      %1415 = vdwg.mxu0
      %1416 = vmatpush.msra.mxu0 0.0
      %1417 = vmatpush.msra.mxu0 0.0
      %1418 = vmatpush.msra.mxu0 0.0
      %1419 = vmatpush.msra.mxu0 0.0
      %1420 = vmatpush.msra.mxu0 0.0
      %1421 = vmatpush.msra.mxu0 0.0
      %1422 = vmatpush.msra.mxu0 0.0
      %1423 = vmatpush.msra.mxu0 0.0
      %1424 = vmatpush.msra.mxu0 0.0
      %1425 = vmatpush.msra.mxu0 0.0
      %1426 = vmatpush.msra.mxu0 0.0
      %1427 = vmatpush.msra.mxu0 0.0
      %1428 = vmatpush.msra.mxu0 0.0
      %1429 = vmatpush.msra.mxu0 0.0
      %1430 = vmatpush.msra.mxu0 %v1372
      %1431 = vmatpush.msra.mxu0 %v1370
      %1432 = vmatmul.f32.gmra.mxu0 %v1388
      %v1433 = vpop.f32.mrf.mxu0
      %v1434 = vadd.f32 %v1380, %v1433
      %1435 = vmatmul.f32.gmra.mxu0 %v1391
      %v1436 = vpop.f32.mrf.mxu0
      %v1437 = vadd.f32 %v1385, %v1436
      %1438 = vdwg.mxu0
      %v1439 = vld [vmem:[%s14] sm:$0xff]
      %v1440 = vld [vmem:[%s15] sm:$0xff]
      %v1442 = vsel %vm1216, %v1440, 0
      %1444 = vmatpush.msra.mxu0 0.0
      %1445 = vmatpush.msra.mxu0 0.0
      %1446 = vmatpush.msra.mxu0 0.0
      %1447 = vmatpush.msra.mxu0 0.0
      %1448 = vmatpush.msra.mxu0 0.0
      %1449 = vmatpush.msra.mxu0 0.0
      %1450 = vmatpush.msra.mxu0 0.0
      %1451 = vmatpush.msra.mxu0 0.0
      %1452 = vmatpush.msra.mxu0 0.0
      %1453 = vmatpush.msra.mxu0 0.0
      %1454 = vmatpush.msra.mxu0 0.0
      %1455 = vmatpush.msra.mxu0 0.0
      %1456 = vmatpush.msra.mxu0 0.0
      %1457 = vmatpush.msra.mxu0 0.0
      %1458 = vmatpush.msra.mxu0 %v1414
      %1459 = vmatpush.msra.mxu0 %v1411
      %1460 = vmatmul.f32.gmra.mxu0 %v1442
      %v1461 = vpop.f32.mrf.mxu0
      %v1462 = vadd.f32 0.0, %v1461
      %1463 = vdwg.mxu0
      %1464 = vmatpush.msra.mxu0 0.0
      %1465 = vmatpush.msra.mxu0 0.0
      %1466 = vmatpush.msra.mxu0 0.0
      %1467 = vmatpush.msra.mxu0 0.0
      %1468 = vmatpush.msra.mxu0 0.0
      %1469 = vmatpush.msra.mxu0 0.0
      %1470 = vmatpush.msra.mxu0 0.0
      %1471 = vmatpush.msra.mxu0 0.0
      %1472 = vmatpush.msra.mxu0 0.0
      %1473 = vmatpush.msra.mxu0 0.0
      %1474 = vmatpush.msra.mxu0 0.0
      %1475 = vmatpush.msra.mxu0 0.0
      %1476 = vmatpush.msra.mxu0 0.0
      %1477 = vmatpush.msra.mxu0 0.0
      %1478 = vmatpush.msra.mxu0 %v1437
      %1479 = vmatpush.msra.mxu0 %v1434
      %1480 = vmatmul.f32.gmra.mxu0 %v1442
      %v1481 = vpop.f32.mrf.mxu0
      %v1482 = vadd.f32 0.0, %v1481
      %1483 = vdwg.mxu0
      %v1485 = vsel %vm1216, %v1439, 0
      %1487 = vmatpush.msra.mxu0 0.0
      %1488 = vmatpush.msra.mxu0 0.0
      %1489 = vmatpush.msra.mxu0 0.0
      %1490 = vmatpush.msra.mxu0 0.0
      %1491 = vmatpush.msra.mxu0 0.0
      %1492 = vmatpush.msra.mxu0 0.0
      %1493 = vmatpush.msra.mxu0 0.0
      %1494 = vmatpush.msra.mxu0 0.0
      %1495 = vmatpush.msra.mxu0 0.0
      %1496 = vmatpush.msra.mxu0 0.0
      %1497 = vmatpush.msra.mxu0 0.0
      %1498 = vmatpush.msra.mxu0 0.0
      %1499 = vmatpush.msra.mxu0 0.0
      %1500 = vmatpush.msra.mxu0 0.0
      %1501 = vmatpush.msra.mxu0 %v1198
      %1502 = vmatpush.msra.mxu0 %v1196
      %1503 = vmatmul.f32.gmra.mxu0 %v1485
      %v1504 = vpop.f32.mrf.mxu0
      %v1505 = vadd.f32 %v1462, %v1504
      %1506 = vdwg.mxu0
      %1507 = vmatpush.msra.mxu0 0.0
      %1508 = vmatpush.msra.mxu0 0.0
      %1509 = vmatpush.msra.mxu0 0.0
      %1510 = vmatpush.msra.mxu0 0.0
      %1511 = vmatpush.msra.mxu0 0.0
      %1512 = vmatpush.msra.mxu0 0.0
      %1513 = vmatpush.msra.mxu0 0.0
      %1514 = vmatpush.msra.mxu0 0.0
      %1515 = vmatpush.msra.mxu0 0.0
      %1516 = vmatpush.msra.mxu0 0.0
      %1517 = vmatpush.msra.mxu0 0.0
      %1518 = vmatpush.msra.mxu0 0.0
      %1519 = vmatpush.msra.mxu0 0.0
      %1520 = vmatpush.msra.mxu0 0.0
      %1521 = vmatpush.msra.mxu0 %v1199
      %1522 = vmatpush.msra.mxu0 %v1197
      %1523 = vmatmul.f32.gmra.mxu0 %v1485
      %v1524 = vpop.f32.mrf.mxu0
      %v1525 = vadd.f32 %v1482, %v1524
      %1526 = vdwg.mxu0
      %v1527 = vld [vmem:[%s16] sm:$0xff]
      %v1529 = vsel %vm1216, %v1527, 0
      %1531 = vmatpush.msra.mxu0 0.0
      %1532 = vmatpush.msra.mxu0 0.0
      %1533 = vmatpush.msra.mxu0 0.0
      %1534 = vmatpush.msra.mxu0 0.0
      %1535 = vmatpush.msra.mxu0 0.0
      %1536 = vmatpush.msra.mxu0 0.0
      %1537 = vmatpush.msra.mxu0 0.0
      %1538 = vmatpush.msra.mxu0 0.0
      %1539 = vmatpush.msra.mxu0 0.0
      %1540 = vmatpush.msra.mxu0 0.0
      %1541 = vmatpush.msra.mxu0 0.0
      %1542 = vmatpush.msra.mxu0 0.0
      %1543 = vmatpush.msra.mxu0 0.0
      %1544 = vmatpush.msra.mxu0 0.0
      %1545 = vmatpush.msra.mxu0 %v1414
      %1546 = vmatpush.msra.mxu0 %v1411
      %1547 = vmatmul.f32.gmra.mxu0 %v1529
      %v1548 = vpop.f32.mrf.mxu0
      %v1549 = vadd.f32 0.0, %v1548
      %1550 = vdwg.mxu0
      %1551 = vmatpush.msra.mxu0 0.0
      %1552 = vmatpush.msra.mxu0 0.0
      %1553 = vmatpush.msra.mxu0 0.0
      %1554 = vmatpush.msra.mxu0 0.0
      %1555 = vmatpush.msra.mxu0 0.0
      %1556 = vmatpush.msra.mxu0 0.0
      %1557 = vmatpush.msra.mxu0 0.0
      %1558 = vmatpush.msra.mxu0 0.0
      %1559 = vmatpush.msra.mxu0 0.0
      %1560 = vmatpush.msra.mxu0 0.0
      %1561 = vmatpush.msra.mxu0 0.0
      %1562 = vmatpush.msra.mxu0 0.0
      %1563 = vmatpush.msra.mxu0 0.0
      %1564 = vmatpush.msra.mxu0 0.0
      %1565 = vmatpush.msra.mxu0 %v1437
      %1566 = vmatpush.msra.mxu0 %v1434
      %1567 = vmatmul.f32.gmra.mxu0 %v1529
      %v1568 = vpop.f32.mrf.mxu0
      %v1569 = vadd.f32 0.0, %v1568
      %1570 = vdwg.mxu0
      %1571 = vmatpush.msra.mxu0 0.0
      %1572 = vmatpush.msra.mxu0 0.0
      %1573 = vmatpush.msra.mxu0 0.0
      %1574 = vmatpush.msra.mxu0 0.0
      %1575 = vmatpush.msra.mxu0 0.0
      %1576 = vmatpush.msra.mxu0 0.0
      %1577 = vmatpush.msra.mxu0 0.0
      %1578 = vmatpush.msra.mxu0 0.0
      %1579 = vmatpush.msra.mxu0 0.0
      %1580 = vmatpush.msra.mxu0 0.0
      %1581 = vmatpush.msra.mxu0 0.0
      %1582 = vmatpush.msra.mxu0 0.0
      %1583 = vmatpush.msra.mxu0 0.0
      %1584 = vmatpush.msra.mxu0 0.0
      %1585 = vmatpush.msra.mxu0 %v1210
      %1586 = vmatpush.msra.mxu0 %v1208
      %1587 = vmatmul.f32.gmra.mxu0 %v1485
      %v1588 = vpop.f32.mrf.mxu0
      %v1589 = vadd.f32 %v1549, %v1588
      %1590 = vdwg.mxu0
      %1591 = vmatpush.msra.mxu0 0.0
      %1592 = vmatpush.msra.mxu0 0.0
      %1593 = vmatpush.msra.mxu0 0.0
      %1594 = vmatpush.msra.mxu0 0.0
      %1595 = vmatpush.msra.mxu0 0.0
      %1596 = vmatpush.msra.mxu0 0.0
      %1597 = vmatpush.msra.mxu0 0.0
      %1598 = vmatpush.msra.mxu0 0.0
      %1599 = vmatpush.msra.mxu0 0.0
      %1600 = vmatpush.msra.mxu0 0.0
      %1601 = vmatpush.msra.mxu0 0.0
      %1602 = vmatpush.msra.mxu0 0.0
      %1603 = vmatpush.msra.mxu0 0.0
      %1604 = vmatpush.msra.mxu0 0.0
      %1605 = vmatpush.msra.mxu0 %v1211
      %1606 = vmatpush.msra.mxu0 %v1209
      %1607 = vmatmul.f32.gmra.mxu0 %v1485
      %v1608 = vpop.f32.mrf.mxu0
      %v1609 = vadd.f32 %v1569, %v1608
      %1610 = vdwg.mxu0
      %v1611 = vpack.c.bf16 %v1505, %v1505
      %v1612 = vpack.c.bf16 %v1525, %v1525
      %v1613 = vld [vmem:[%s5] sm:$0xff]
      %v1614 = vld [vmem:[%s5 + $0x8] sm:$0xff]
      %v1615 = vld [vmem:[%s5 + $0x10] sm:$0xff]
      %v1616 = vld [vmem:[%s5 + $0x18] sm:$0xff]
      %v1617 = vld [vmem:[%s5 + $0x20] sm:$0xff]
      %v1618 = vld [vmem:[%s5 + $0x28] sm:$0xff]
      %v1619 = vld [vmem:[%s5 + $0x30] sm:$0xff]
      %v1620 = vld [vmem:[%s5 + $0x38] sm:$0xff]
      %v1621 = vld [vmem:[%s5 + $0x40] sm:$0xff]
      %v1622 = vld [vmem:[%s5 + $0x48] sm:$0xff]
      %v1623 = vld [vmem:[%s5 + $0x50] sm:$0xff]
      %v1624 = vld [vmem:[%s5 + $0x58] sm:$0xff]
      %v1625 = vld [vmem:[%s5 + $0x60] sm:$0xff]
      %v1626 = vld [vmem:[%s5 + $0x68] sm:$0xff]
      %v1627 = vld [vmem:[%s5 + $0x70] sm:$0xff]
      %v1628 = vld [vmem:[%s5 + $0x78] sm:$0xff]
      %v1629 = vld [vmem:[%s5 + $0x80] sm:$0xff]
      %v1630 = vld [vmem:[%s5 + $0x88] sm:$0xff]
      %v1631 = vpack.c.bf16 %v1589, %v1589
      %v1632 = vpack.c.bf16 %v1609, %v1609
      %v1633 = vld [vmem:[%s6] sm:$0xff]
      %v1634 = vld [vmem:[%s6 + $0x8] sm:$0xff]
      %v1635 = vld [vmem:[%s6 + $0x10] sm:$0xff]
      %v1636 = vld [vmem:[%s6 + $0x18] sm:$0xff]
      %v1637 = vld [vmem:[%s6 + $0x20] sm:$0xff]
      %v1638 = vld [vmem:[%s6 + $0x28] sm:$0xff]
      %v1639 = vld [vmem:[%s6 + $0x30] sm:$0xff]
      %v1640 = vld [vmem:[%s6 + $0x38] sm:$0xff]
      %v1641 = vld [vmem:[%s6 + $0x40] sm:$0xff]
      %v1642 = vld [vmem:[%s6 + $0x48] sm:$0xff]
      %v1643 = vld [vmem:[%s6 + $0x50] sm:$0xff]
      %v1644 = vld [vmem:[%s6 + $0x58] sm:$0xff]
      %v1645 = vld [vmem:[%s6 + $0x60] sm:$0xff]
      %v1646 = vld [vmem:[%s6 + $0x68] sm:$0xff]
      %v1647 = vld [vmem:[%s6 + $0x70] sm:$0xff]
      %v1648 = vld [vmem:[%s6 + $0x78] sm:$0xff]
      %v1649 = vld [vmem:[%s6 + $0x80] sm:$0xff]
      %v1650 = vld [vmem:[%s6 + $0x88] sm:$0xff]
      %v1669 = vunpack.c.l.b16 %v1633
      %v1670 = vunpack.c.h.b16 %v1633
      %v1671 = vunpack.c.l.b16 %v1634
      %v1672 = vunpack.c.h.b16 %v1634
      %v1673 = vunpack.c.l.b16 %v1635
      %v1674 = vunpack.c.h.b16 %v1635
      %v1675 = vunpack.c.l.b16 %v1636
      %v1676 = vunpack.c.h.b16 %v1636
      %v1677 = vunpack.c.l.b16 %v1637
      %v1678 = vunpack.c.h.b16 %v1637
      %v1679 = vunpack.c.l.b16 %v1638
      %v1680 = vunpack.c.h.b16 %v1638
      %v1681 = vunpack.c.l.b16 %v1639
      %v1682 = vunpack.c.h.b16 %v1639
      %v1683 = vunpack.c.l.b16 %v1640
      %v1684 = vunpack.c.h.b16 %v1640
      %v1685 = vunpack.c.l.b16 %v1641
      %v1686 = vunpack.c.h.b16 %v1641
      %v1687 = vunpack.c.l.b16 %v1642
      %v1688 = vunpack.c.h.b16 %v1642
      %v1689 = vunpack.c.l.b16 %v1643
      %v1690 = vunpack.c.h.b16 %v1643
      %v1691 = vunpack.c.l.b16 %v1644
      %v1692 = vunpack.c.h.b16 %v1644
      %v1693 = vunpack.c.l.b16 %v1645
      %v1694 = vunpack.c.h.b16 %v1645
      %v1695 = vunpack.c.l.b16 %v1646
      %v1696 = vunpack.c.h.b16 %v1646
      %v1697 = vunpack.c.l.b16 %v1647
      %v1698 = vunpack.c.h.b16 %v1647
      %v1699 = vunpack.c.l.b16 %v1648
      %v1700 = vunpack.c.h.b16 %v1648
      %v1701 = vunpack.c.l.b16 %v1649
      %v1702 = vunpack.c.h.b16 %v1649
      %v1703 = vunpack.c.l.b16 %v1650
      %v1704 = vunpack.c.h.b16 %v1650
      %v1705 = vpack.c.b16 %v1671, %v1669
      %v1706 = vpack.c.b16 %v1672, %v1670
      %v1707 = vpack.c.b16 %v1675, %v1673
      %v1708 = vpack.c.b16 %v1676, %v1674
      %v1709 = vpack.c.b16 %v1679, %v1677
      %v1710 = vpack.c.b16 %v1680, %v1678
      %v1711 = vpack.c.b16 %v1683, %v1681
      %v1712 = vpack.c.b16 %v1684, %v1682
      %v1713 = vpack.c.b16 %v1687, %v1685
      %v1714 = vpack.c.b16 %v1688, %v1686
      %v1715 = vpack.c.b16 %v1691, %v1689
      %v1716 = vpack.c.b16 %v1692, %v1690
      %v1717 = vpack.c.b16 %v1695, %v1693
      %v1718 = vpack.c.b16 %v1696, %v1694
      %v1719 = vpack.c.b16 %v1699, %v1697
      %v1720 = vpack.c.b16 %v1700, %v1698
      %v1721 = vpack.c.b16 %v1703, %v1701
      %v1722 = vpack.c.b16 %v1704, %v1702
      %v1742 = vsel %vm1216, %v1632, 0
      %1744 = vmatpush.bf16.msra.mxu0 %v1719
      %1745 = vmatpush.bf16.msra.mxu0 %v1717
      %1746 = vmatpush.bf16.msra.mxu0 %v1715
      %1747 = vmatpush.bf16.msra.mxu0 %v1713
      %1748 = vmatpush.bf16.msra.mxu0 %v1711
      %1749 = vmatpush.bf16.msra.mxu0 %v1709
      %1750 = vmatpush.bf16.msra.mxu0 %v1707
      %1751 = vmatpush.bf16.msra.mxu0 %v1705
      %1752 = vmatmul.bf16.gmra.mxu0 %v1631
      %v1753 = vpop.f32.mrf.mxu0
      %v1754 = vadd.f32 0.0, %v1753
      %v1755 = vpop.f32.mrf.mxu0
      %1756 = vdwg.mxu0
      %1757 = vmatpush.bf16.msra.mxu0 0
      %1758 = vmatpush.bf16.msra.mxu0 0
      %1759 = vmatpush.bf16.msra.mxu0 0
      %1760 = vmatpush.bf16.msra.mxu0 0
      %1761 = vmatpush.bf16.msra.mxu0 0
      %1762 = vmatpush.bf16.msra.mxu0 0
      %1763 = vmatpush.bf16.msra.mxu0 0
      %1764 = vmatpush.bf16.msra.mxu0 %v1721
      %1765 = vmatmul.bf16.gmra.mxu0 %v1742
      %v1766 = vpop.f32.mrf.mxu0
      %v1767 = vadd.f32 %v1754, %v1766
      %v1768 = vpop.f32.mrf.mxu0
      %1769 = vdwg.mxu0
      %1770 = vmatpush.bf16.msra.mxu0 %v1720
      %1771 = vmatpush.bf16.msra.mxu0 %v1718
      %1772 = vmatpush.bf16.msra.mxu0 %v1716
      %1773 = vmatpush.bf16.msra.mxu0 %v1714
      %1774 = vmatpush.bf16.msra.mxu0 %v1712
      %1775 = vmatpush.bf16.msra.mxu0 %v1710
      %1776 = vmatpush.bf16.msra.mxu0 %v1708
      %1777 = vmatpush.bf16.msra.mxu0 %v1706
      %1778 = vmatmul.bf16.gmra.mxu0 %v1631
      %v1779 = vpop.f32.mrf.mxu0
      %v1780 = vadd.f32 0.0, %v1779
      %v1781 = vpop.f32.mrf.mxu0
      %1782 = vdwg.mxu0
      %1783 = vmatpush.bf16.msra.mxu0 0
      %1784 = vmatpush.bf16.msra.mxu0 0
      %1785 = vmatpush.bf16.msra.mxu0 0
      %1786 = vmatpush.bf16.msra.mxu0 0
      %1787 = vmatpush.bf16.msra.mxu0 0
      %1788 = vmatpush.bf16.msra.mxu0 0
      %1789 = vmatpush.bf16.msra.mxu0 0
      %1790 = vmatpush.bf16.msra.mxu0 %v1722
      %1791 = vmatmul.bf16.gmra.mxu0 %v1742
      %v1792 = vpop.f32.mrf.mxu0
      %v1793 = vadd.f32 %v1780, %v1792
      %v1794 = vpop.f32.mrf.mxu0
      %1795 = vdwg.mxu0
      %v1814 = vunpack.c.l.b16 %v1613
      %v1815 = vunpack.c.h.b16 %v1613
      %v1816 = vunpack.c.l.b16 %v1614
      %v1817 = vunpack.c.h.b16 %v1614
      %v1818 = vunpack.c.l.b16 %v1615
      %v1819 = vunpack.c.h.b16 %v1615
      %v1820 = vunpack.c.l.b16 %v1616
      %v1821 = vunpack.c.h.b16 %v1616
      %v1822 = vunpack.c.l.b16 %v1617
      %v1823 = vunpack.c.h.b16 %v1617
      %v1824 = vunpack.c.l.b16 %v1618
      %v1825 = vunpack.c.h.b16 %v1618
      %v1826 = vunpack.c.l.b16 %v1619
      %v1827 = vunpack.c.h.b16 %v1619
      %v1828 = vunpack.c.l.b16 %v1620
      %v1829 = vunpack.c.h.b16 %v1620
      %v1830 = vunpack.c.l.b16 %v1621
      %v1831 = vunpack.c.h.b16 %v1621
      %v1832 = vunpack.c.l.b16 %v1622
      %v1833 = vunpack.c.h.b16 %v1622
      %v1834 = vunpack.c.l.b16 %v1623
      %v1835 = vunpack.c.h.b16 %v1623
      %v1836 = vunpack.c.l.b16 %v1624
      %v1837 = vunpack.c.h.b16 %v1624
      %v1838 = vunpack.c.l.b16 %v1625
      %v1839 = vunpack.c.h.b16 %v1625
      %v1840 = vunpack.c.l.b16 %v1626
      %v1841 = vunpack.c.h.b16 %v1626
      %v1842 = vunpack.c.l.b16 %v1627
      %v1843 = vunpack.c.h.b16 %v1627
      %v1844 = vunpack.c.l.b16 %v1628
      %v1845 = vunpack.c.h.b16 %v1628
      %v1846 = vunpack.c.l.b16 %v1629
      %v1847 = vunpack.c.h.b16 %v1629
      %v1848 = vunpack.c.l.b16 %v1630
      %v1849 = vunpack.c.h.b16 %v1630
      %v1850 = vpack.c.b16 %v1816, %v1814
      %v1851 = vpack.c.b16 %v1817, %v1815
      %v1852 = vpack.c.b16 %v1820, %v1818
      %v1853 = vpack.c.b16 %v1821, %v1819
      %v1854 = vpack.c.b16 %v1824, %v1822
      %v1855 = vpack.c.b16 %v1825, %v1823
      %v1856 = vpack.c.b16 %v1828, %v1826
      %v1857 = vpack.c.b16 %v1829, %v1827
      %v1858 = vpack.c.b16 %v1832, %v1830
      %v1859 = vpack.c.b16 %v1833, %v1831
      %v1860 = vpack.c.b16 %v1836, %v1834
      %v1861 = vpack.c.b16 %v1837, %v1835
      %v1862 = vpack.c.b16 %v1840, %v1838
      %v1863 = vpack.c.b16 %v1841, %v1839
      %v1864 = vpack.c.b16 %v1844, %v1842
      %v1865 = vpack.c.b16 %v1845, %v1843
      %v1866 = vpack.c.b16 %v1848, %v1846
      %v1867 = vpack.c.b16 %v1849, %v1847
      %v1887 = vsel %vm1216, %v1612, 0
      %1889 = vmatpush.bf16.msra.mxu0 %v1864
      %1890 = vmatpush.bf16.msra.mxu0 %v1862
      %1891 = vmatpush.bf16.msra.mxu0 %v1860
      %1892 = vmatpush.bf16.msra.mxu0 %v1858
      %1893 = vmatpush.bf16.msra.mxu0 %v1856
      %1894 = vmatpush.bf16.msra.mxu0 %v1854
      %1895 = vmatpush.bf16.msra.mxu0 %v1852
      %1896 = vmatpush.bf16.msra.mxu0 %v1850
      %1897 = vmatmul.bf16.gmra.mxu0 %v1611
      %v1898 = vpop.f32.mrf.mxu0
      %v1899 = vadd.f32 %v1767, %v1898
      %v1900 = vpop.f32.mrf.mxu0
      %1901 = vdwg.mxu0
      %1902 = vmatpush.bf16.msra.mxu0 0
      %1903 = vmatpush.bf16.msra.mxu0 0
      %1904 = vmatpush.bf16.msra.mxu0 0
      %1905 = vmatpush.bf16.msra.mxu0 0
      %1906 = vmatpush.bf16.msra.mxu0 0
      %1907 = vmatpush.bf16.msra.mxu0 0
      %1908 = vmatpush.bf16.msra.mxu0 0
      %1909 = vmatpush.bf16.msra.mxu0 %v1866
      %1910 = vmatmul.bf16.gmra.mxu0 %v1887
      %v1911 = vpop.f32.mrf.mxu0
      %v1912 = vadd.f32 %v1899, %v1911
      %v1913 = vpop.f32.mrf.mxu0
      %1914 = vdwg.mxu0
      %1915 = vmatpush.bf16.msra.mxu0 %v1865
      %1916 = vmatpush.bf16.msra.mxu0 %v1863
      %1917 = vmatpush.bf16.msra.mxu0 %v1861
      %1918 = vmatpush.bf16.msra.mxu0 %v1859
      %1919 = vmatpush.bf16.msra.mxu0 %v1857
      %1920 = vmatpush.bf16.msra.mxu0 %v1855
      %1921 = vmatpush.bf16.msra.mxu0 %v1853
      %1922 = vmatpush.bf16.msra.mxu0 %v1851
      %1923 = vmatmul.bf16.gmra.mxu0 %v1611
      %v1924 = vpop.f32.mrf.mxu0
      %v1925 = vadd.f32 %v1793, %v1924
      %v1926 = vpop.f32.mrf.mxu0
      %1927 = vdwg.mxu0
      %1928 = vmatpush.bf16.msra.mxu0 0
      %1929 = vmatpush.bf16.msra.mxu0 0
      %1930 = vmatpush.bf16.msra.mxu0 0
      %1931 = vmatpush.bf16.msra.mxu0 0
      %1932 = vmatpush.bf16.msra.mxu0 0
      %1933 = vmatpush.bf16.msra.mxu0 0
      %1934 = vmatpush.bf16.msra.mxu0 0
      %1935 = vmatpush.bf16.msra.mxu0 %v1867
      %1936 = vmatmul.bf16.gmra.mxu0 %v1887
      %v1937 = vpop.f32.mrf.mxu0
      %v1938 = vadd.f32 %v1925, %v1937
      %v1939 = vpop.f32.mrf.mxu0
      %1940 = vdwg.mxu0
      %v1941 = vld [vmem:[%s17] sm:$0xff]
      %1943 = vset.pattern.permute.xlu0 0
      %1944 = vperm.xlu0 %1943, %v1941
      %v1945 = vpop.permute.xlu0 %1944
      %v1947 = vadd.f32 %v1912, %v1945
      %v1948 = vadd.f32 %v1938, %v1945
      %1949 = vst [vmem:[%s575] sm:$0xff] %v1947
      %1950 = vst [vmem:[%s575 + $0x8] sm:$0xff] %v1948
      %p1951 = scmp.lt.s32.totalorder %s29, 1
      %s1952 = scalar_select %p1951, %s29, 1
      %s1953 = smul.addr %s1952, 2
      %s1954 = smul.addr %s1953, 8
      %s1955 = scalar_lea.vmem %s18, %s1954
      // Predicated region
      $region93: #{fourier_filter_block.1} parent=91 // pred_check
        %p1956 = pneg %p430
      $region94: #{fourier_filter_block.1} parent=91 // pred_check_branch
        %1958 = sbr.rel (%p1956) target = $region96
      $region95: #{fourier_filter_block.1} parent=91 // pred_region
        _
      $region96: #{fourier_filter_block.1} parent=91 // pred_fallthru
        _
    $region92: #{fourier_filter_block.1} parent=5 // pred_fallthru
      _
    %p1959 = scmp.le.s32.totalorder 2, %s24
    // Predicated region
    $region97: #{fourier_filter_block.1} parent=5 // pred_check
      %p1960 = pneg %p1959
    $region98: #{fourier_filter_block.1} parent=5 // pred_check_branch
      %1962 = sbr.rel (%p1960) target = $region100
    $region99: #{fourier_filter_block.1} parent=5 // pred_region
      %s1963 = ssub.s32 %s24, 2
      // Predicated region
      $region101: #{fourier_filter_block.1} parent=99 // pred_check
        %p1964 = pneg %p436
      $region102: #{fourier_filter_block.1} parent=99 // pred_check_branch
        %1966 = sbr.rel (%p1964) target = $region104
      $region103: #{fourier_filter_block.1} parent=99 // pred_region
        %p1967 = scmp.lt.s32.totalorder %s30, 1
        %s1968 = scalar_select %p1967, %s30, 1
        %s1969 = smul.addr %s1968, 2
        %s1970 = smul.addr %s1969, 8
        %s1971 = scalar_lea.vmem %s18, %s1970
      $region104: #{fourier_filter_block.1} parent=99 // pred_fallthru
        _
    $region100: #{fourier_filter_block.1} parent=5 // pred_fallthru
      _
  $region6: #{fourier_filter_block.1} parent=0 // loop_footer
    %s28 = sadd.s32 1, %s24
  $region7: #{fourier_filter_block.1} parent=0 // loop_footer_branch
    %23 = sbr.rel target = $region3
  $region8: #{fourier_filter_block.1} parent=0 // loop_exit
    _

</llo_original>
